<compile_context>
chip_gen: v6e
topology: v6e:2x2x1
jax: 0.10.0
libtpu: 0.0.40
codegen_flags: <defaults>
</compile_context>

<pallas_src>
import math
import functools

import numpy as np
import jax
import jax.numpy as jnp
from jax.experimental import pallas as pl
from jax.experimental.pallas import tpu as pltpu


# ----------------------------------------------------------------------------
# Fused Pallas kernel: one grid step == one batch element.
#   RMSNorm -> fused QKV -> RoPE(Q only) -> GQA softmax attention -> out proj
#   -> residual add, all in VMEM.
# ----------------------------------------------------------------------------
def _fused_doge_layer_attn_kernel(x_ref, rmsw_ref, wqkv_ref, bqkv_ref, rot_ref,
                                  cos_ref, sin_ref, wo_ref, bo_ref, o_ref, *,
                                  hidden_size, num_heads, head_dim, n_rep,
                                  q_dim, kv_dim, eps, mxu_dtype):
    def mx(a):
        # Optional bf16 cast for MXU operands (v6e/v7x MXU is bf16-native);
        # accumulation stays fp32 via preferred_element_type.
        return a if mxu_dtype is None else a.astype(mxu_dtype)

    # x is a (T, n_pad) lane-dense slab; lanes >= hidden_size are exactly zero.
    x = x_ref[...].astype(jnp.float32)

    # ---- in_attn_layernorm (RMSNorm). Pad lanes contribute 0 to the sum, so
    #      dividing by the true hidden_size gives the exact mean-of-squares. ----
    var = jnp.sum(x * x, axis=-1, keepdims=True) * (1.0 / hidden_size)
    xn = x * jax.lax.rsqrt(var + eps) * rmsw_ref[...].astype(jnp.float32)

    # ---- fused QKV projection: one MXU matmul (K dim is the padded 128 lanes;
    #      pad rows of wqkv are zero so the result is exact). ----
    qkv = jnp.dot(mx(xn), mx(wqkv_ref[...]), preferred_element_type=jnp.float32)
    qkv = qkv + bqkv_ref[...].astype(jnp.float32)                 # (T, q+2kv)
    q = qkv[:, :q_dim]                                            # (T, H*hd)
    k = qkv[:, q_dim:q_dim + kv_dim]                              # (T, Hkv*hd)
    v = qkv[:, q_dim + kv_dim:q_dim + 2 * kv_dim]                 # (T, Hkv*hd)

    # ---- RoPE on Q only (module quirk: apply_QK_rotary_pos_emb(q, q, ...)).
    #      rotate_half for ALL heads at once via a block-diag +-1 matmul (MXU).
    #      cos/sin tables already carry the 1/sqrt(head_dim) score scale. ----
    cos = cos_ref[...].astype(jnp.float32)                        # (T, H*hd)
    sin = sin_ref[...].astype(jnp.float32)
    q_rh = jnp.dot(mx(q), mx(rot_ref[...]), preferred_element_type=jnp.float32)
    q_rot = q * cos + q_rh * sin                                  # pre-scaled

    # ---- grouped-query attention, all heads in this single invocation ----
    heads = []
    for h in range(num_heads):                    # static, unrolled (H=4)
        g = h // n_rep                            # repeat_kv: head h -> kv head h//n_rep
        qh = q_rot[:, h * head_dim:(h + 1) * head_dim]            # (T, hd)
        kh = k[:, g * head_dim:(g + 1) * head_dim]                # (T, hd) (NOT rotated)
        vh = v[:, g * head_dim:(g + 1) * head_dim]                # (T, hd)
        s = jnp.dot(mx(qh), mx(kh).T, preferred_element_type=jnp.float32)
        # softmax in float32 (matches F.softmax(..., dtype=torch.float32))
        s = s - jnp.max(s, axis=-1, keepdims=True)
        p = jnp.exp(s)
        p = p * pl.reciprocal(jnp.sum(p, axis=-1, keepdims=True), approx=False)
        heads.append(jnp.dot(mx(p), mx(vh), preferred_element_type=jnp.float32))
    attn = jnp.concatenate(heads, axis=-1)        # (T, H*hd) == (T, D), head-major

    # ---- output projection (N padded to 128 lanes) + residual add.
    #      Pad columns of wo/bo and pad lanes of x are all zero -> output pad
    #      lanes stay zero and the store is a full-lane unmasked vst. ----
    out = jnp.dot(mx(attn), mx(wo_ref[...]), preferred_element_type=jnp.float32)
    out = out + bo_ref[...].astype(jnp.float32)
    o_ref[...] = (out + x).astype(o_ref.dtype)    # residual uses PRE-norm x


def _rotate_half_matrix(num_heads, head_dim):
    """Block-diagonal R with (q @ R) == rotate_half(q) applied per head."""
    half = head_dim // 2
    r = np.zeros((head_dim, head_dim), dtype=np.float32)
    r[half:, :half] = -np.eye(half, dtype=np.float32)   # cols [0, half)  <- -x2
    r[:half, half:] = np.eye(half, dtype=np.float32)    # cols [half, hd) <-  x1
    return np.kron(np.eye(num_heads, dtype=np.float32), r)


# ----------------------------------------------------------------------------
# Wrapper: builds fused/padded weights and issues the single pallas_call.
# ----------------------------------------------------------------------------
def doge_attention_layer_forward(hidden_states, params, cos, sin,
                                 num_attention_heads, num_attention_groups,
                                 rms_eps=1e-6, mxu_dtype=None):
    """residual + DogeAttention(RMSNorm(hidden_states)); dropout is identity (eval)."""
    B, T, D = hidden_states.shape
    H = num_attention_heads
    hd = D // H
    n_rep = num_attention_groups
    Hkv = H // n_rep
    q_dim = H * hd
    kv_dim = Hkv * hd
    dtype = hidden_states.dtype
    scale = 1.0 / math.sqrt(hd)

    # Lane-dense activation slab: pad hidden dim to a multiple of 128.
    n_pad = ((D + 127) // 128) * 128
    x2d = hidden_states.reshape(B * T, D)
    x_pad = jnp.zeros((B * T, n_pad), dtype).at[:, :D].set(x2d)

    # RMSNorm weight (pad lanes zero so normalized pad lanes stay zero).
    rmsw = jnp.zeros((1, n_pad), dtype).at[0, :D].set(params["rms_w"])

    # Fused QKV weight/bias -> one matmul; pad the K (row) dim to n_pad with zeros.
    wqkv = jnp.concatenate([params["q_w"], params["k_w"], params["v_w"]], axis=1)
    wqkv_pad = jnp.zeros((n_pad, q_dim + 2 * kv_dim), dtype).at[:D, :].set(wqkv)
    bqkv = jnp.concatenate([params["q_b"], params["k_b"], params["v_b"]], axis=1)

    # cos/sin supplied as (T, hd); tile across heads (B-invariant table) and fold
    # the 1/sqrt(head_dim) attention-score scale into the constant tables.
    cos_h = jnp.tile(cos.astype(jnp.float32), (1, H)) * scale      # (T, H*hd)
    sin_h = jnp.tile(sin.astype(jnp.float32), (1, H)) * scale
    cos_h = cos_h.astype(dtype)
    sin_h = sin_h.astype(dtype)

    rot = jnp.asarray(_rotate_half_matrix(H, hd), dtype=dtype)     # (H*hd, H*hd)

    # Out-projection padded to n_pad lanes (pad columns zero).
    wo_pad = jnp.zeros((D, n_pad), dtype).at[:, :D].set(params["o_w"])
    bo_pad = jnp.zeros((1, n_pad), dtype).at[:, :D].set(params["o_b"])

    kernel = functools.partial(
        _fused_doge_layer_attn_kernel,
        hidden_size=D, num_heads=H, head_dim=hd, n_rep=n_rep,
        q_dim=q_dim, kv_dim=kv_dim, eps=rms_eps, mxu_dtype=mxu_dtype)

    out = pl.pallas_call(
        kernel,
        out_shape=jax.ShapeDtypeStruct((B * T, n_pad), dtype),
        grid=(B,),                                   # "parallel" -> v7x 2-TC sharding
        in_specs=[
            pl.BlockSpec((T, n_pad), lambda b: (b, 0)),                  # x (padded)
            pl.BlockSpec((1, n_pad), lambda b: (0, 0)),                  # RMSNorm weight
            pl.BlockSpec((n_pad, q_dim + 2 * kv_dim), lambda b: (0, 0)), # fused QKV weight
            pl.BlockSpec((1, q_dim + 2 * kv_dim), lambda b: (0, 0)),     # fused QKV bias
            pl.BlockSpec((q_dim, q_dim), lambda b: (0, 0)),              # rotate_half matrix
            pl.BlockSpec((T, q_dim), lambda b: (0, 0)),                  # cos (pre-scaled)
            pl.BlockSpec((T, q_dim), lambda b: (0, 0)),                  # sin (pre-scaled)
            pl.BlockSpec((D, n_pad), lambda b: (0, 0)),                  # out-proj weight
            pl.BlockSpec((1, n_pad), lambda b: (0, 0)),                  # out-proj bias
        ],
        out_specs=pl.BlockSpec((T, n_pad), lambda b: (b, 0)),
        compiler_params=pltpu.CompilerParams(
            dimension_semantics=("parallel",)),
    )(x_pad, rmsw, wqkv_pad, bqkv, rot, cos_h, sin_h, wo_pad, bo_pad)

    return out[:, :D].reshape(B, T, D)


def make_rotary(T, hd, dtype=jnp.float32, base=10000.0):
    inv_freq = 1.0 / (base ** (jnp.arange(0, hd, 2, dtype=jnp.float32) / hd))
    pos = jnp.arange(T, dtype=jnp.float32)
    freqs = jnp.einsum("t,f->tf", pos, inv_freq)          # (T, hd/2)
    emb = jnp.concatenate([freqs, freqs], axis=-1)        # (T, hd)
    return jnp.cos(emb).astype(dtype), jnp.sin(emb).astype(dtype)


# ----------------------------------------------------------------------------
# Pure-JAX reference (mirrors the PyTorch module) for a correctness check.
# ----------------------------------------------------------------------------
def _reference_attention(hidden_states, params, cos, sin, H, n_groups):
    B, T, D = hidden_states.shape
    hd = D // H
    Hkv = H // n_groups
    x = hidden_states.reshape(B * T, D)
    q = (x @ params["q_w"] + params["q_b"]).reshape(B, T, H, hd).transpose(0, 2, 1, 3)
    k = (x @ params["k_w"] + params["k_b"]).reshape(B, T, Hkv, hd).transpose(0, 2, 1, 3)
    v = (x @ params["v_w"] + params["v_b"]).reshape(B, T, Hkv, hd).transpose(0, 2, 1, 3)

    def rotate_half(a):
        a1, a2 = a[..., : hd // 2], a[..., hd // 2:]
        return jnp.concatenate([-a2, a1], axis=-1)

    cos_b, sin_b = cos[None, None], sin[None, None]        # (1,1,T,hd)
    q = q * cos_b + rotate_half(q) * sin_b                  # RoPE on Q only (module quirk)
    k = jnp.repeat(k, n_groups, axis=1)                     # repeat_kv
    v = jnp.repeat(v, n_groups, axis=1)
    s = jnp.einsum("bhqd,bhkd->bhqk", q, k) / math.sqrt(hd)
    p = jax.nn.softmax(s.astype(jnp.float32), axis=-1).astype(q.dtype)
    o = jnp.einsum("bhqk,bhkd->bhqd", p, v)
    o = o.transpose(0, 2, 1, 3).reshape(B * T, D)
    return (o @ params["o_w"] + params["o_b"]).reshape(B, T, D)


def reference_layer_attention_half(hidden_states, params, cos, sin, H, n_groups,
                                   eps=1e-6):
    xf = hidden_states.astype(jnp.float32)
    var = jnp.mean(xf * xf, axis=-1, keepdims=True)
    xn = (xf * jax.lax.rsqrt(var + eps)).astype(hidden_states.dtype)
    xn = xn * params["rms_w"]
    attn_out = _reference_attention(xn, params, cos, sin, H, n_groups)
    return hidden_states + attn_out                         # dropout = identity (eval)


if __name__ == "__main__":
    # Small synthetic config (matches the module's shape relations).
    B, T = 2, 8
    hidden_size = 32
    num_attention_heads = 4
    num_attention_groups = 2
    num_key_value_heads = num_attention_heads // num_attention_groups
    head_dim = hidden_size // num_attention_heads
    dtype = jnp.float32

    key = jax.random.PRNGKey(0)
    keys = jax.random.split(key, 12)

    def init_w(k, fan_in, fan_out):
        # torch nn.Linear weight is (out, in); stored transposed as (in, out).
        return jax.random.normal(k, (fan_in, fan_out), dtype) * 0.05

    params = {
        "rms_w": 1.0 + 0.05 * jax.random.normal(keys[9], (hidden_size,), dtype),
        "q_w": init_w(keys[0], hidden_size, head_dim * num_attention_heads),
        "q_b": jax.random.normal(keys[1], (1, head_dim * num_attention_heads), dtype) * 0.01,
        "k_w": init_w(keys[2], hidden_size, head_dim * num_key_value_heads),
        "k_b": jax.random.normal(keys[3], (1, head_dim * num_key_value_heads), dtype) * 0.01,
        "v_w": init_w(keys[4], hidden_size, head_dim * num_key_value_heads),
        "v_b": jax.random.normal(keys[5], (1, head_dim * num_key_value_heads), dtype) * 0.01,
        "o_w": init_w(keys[6], hidden_size, hidden_size),
        "o_b": jax.random.normal(keys[7], (1, hidden_size), dtype) * 0.01,
    }

    hidden_states = jax.random.normal(keys[8], (B, T, hidden_size), dtype)
    cos, sin = make_rotary(T, head_dim, dtype)          # (T, hd) — no batch broadcast

    out = doge_attention_layer_forward(hidden_states, params, cos, sin,
                                       num_attention_heads, num_attention_groups,
                                       mxu_dtype=None)  # set jnp.bfloat16 for v6e/v7x MXU speed
    out = jax.block_until_ready(out)

    ref = reference_layer_attention_half(hidden_states, params, cos, sin,
                                         num_attention_heads, num_attention_groups)
    ref = jax.block_until_ready(ref)

    assert out.shape == (B, T, hidden_size)
    assert bool(jnp.all(jnp.isfinite(out)))
    assert bool(jnp.allclose(out, ref, atol=1e-2, rtol=1e-2))
    print("KERNEL_OK")
</pallas_src>

<mosaic_0001>
module attributes {stable_mosaic.version = 11 : i64} {
  func.func @_fused_doge_layer_attn_kernel(%arg0: i32, %arg1: memref<8x128xf32, #tpu.memory_space<vmem>>, %arg2: memref<1x128xf32, #tpu.memory_space<vmem>>, %arg3: memref<128x64xf32, #tpu.memory_space<vmem>>, %arg4: memref<1x64xf32, #tpu.memory_space<vmem>>, %arg5: memref<32x32xf32, #tpu.memory_space<vmem>>, %arg6: memref<8x32xf32, #tpu.memory_space<vmem>>, %arg7: memref<8x32xf32, #tpu.memory_space<vmem>>, %arg8: memref<32x128xf32, #tpu.memory_space<vmem>>, %arg9: memref<1x128xf32, #tpu.memory_space<vmem>>, %arg10: memref<8x128xf32, #tpu.memory_space<vmem>>) attributes {dimension_semantics = [#tpu.dimension_semantics<parallel>], iteration_bounds = array<i64: 2>, scalar_prefetch = 0 : i64, scratch_operands = 0 : i64, tpu.core_type = #tpu.core_type<tc>, window_params = [{transform_indices = @transform_0, window_bounds = array<i64: 8, 128>}, {pipeline_mode = #tpu.pipeline_mode<synchronous>, transform_indices = @transform_1, window_bounds = array<i64: 1, 128>}, {pipeline_mode = #tpu.pipeline_mode<synchronous>, transform_indices = @transform_2, window_bounds = array<i64: 128, 64>}, {pipeline_mode = #tpu.pipeline_mode<synchronous>, transform_indices = @transform_3, window_bounds = array<i64: 1, 64>}, {pipeline_mode = #tpu.pipeline_mode<synchronous>, transform_indices = @transform_4, window_bounds = array<i64: 32, 32>}, {pipeline_mode = #tpu.pipeline_mode<synchronous>, transform_indices = @transform_5, window_bounds = array<i64: 8, 32>}, {pipeline_mode = #tpu.pipeline_mode<synchronous>, transform_indices = @transform_6, window_bounds = array<i64: 8, 32>}, {pipeline_mode = #tpu.pipeline_mode<synchronous>, transform_indices = @transform_7, window_bounds = array<i64: 32, 128>}, {pipeline_mode = #tpu.pipeline_mode<synchronous>, transform_indices = @transform_8, window_bounds = array<i64: 1, 128>}, {transform_indices = @transform_9, window_bounds = array<i64: 8, 128>}]} {
    %c0 = arith.constant 0 : index
    %c0_0 = arith.constant 0 : index
    %0 = vector.load %arg1[%c0, %c0_0] : memref<8x128xf32, #tpu.memory_space<vmem>>, vector<8x128xf32>
    %1 = arith.mulf %0, %0 : vector<8x128xf32>
    %cst = arith.constant dense<0.000000e+00> : vector<8xf32>
    %2 = vector.multi_reduction <add>, %1, %cst [1] : vector<8x128xf32> to vector<8xf32>
    %3 = vector.shape_cast %2 : vector<8xf32> to vector<8x1xf32>
    %cst_1 = arith.constant 3.125000e-02 : f32
    %4 = vector.broadcast %cst_1 : f32 to vector<8x1xf32>
    %5 = arith.mulf %3, %4 : vector<8x1xf32>
    %cst_2 = arith.constant 9.99999997E-7 : f32
    %6 = vector.broadcast %cst_2 : f32 to vector<8x1xf32>
    %7 = arith.addf %5, %6 : vector<8x1xf32>
    %8 = math.rsqrt %7 : vector<8x1xf32>
    %9 = vector.broadcast %8 : vector<8x1xf32> to vector<8x128xf32>
    %10 = arith.mulf %0, %9 : vector<8x128xf32>
    %c0_3 = arith.constant 0 : index
    %c0_4 = arith.constant 0 : index
    %11 = vector.load %arg2[%c0_3, %c0_4] : memref<1x128xf32, #tpu.memory_space<vmem>>, vector<1x128xf32>
    %12 = vector.broadcast %11 : vector<1x128xf32> to vector<8x128xf32>
    %13 = arith.mulf %10, %12 : vector<8x128xf32>
    %c0_5 = arith.constant 0 : index
    %c0_6 = arith.constant 0 : index
    %14 = vector.load %arg3[%c0_5, %c0_6] : memref<128x64xf32, #tpu.memory_space<vmem>>, vector<128x64xf32>
    %cst_7 = arith.constant dense<0.000000e+00> : vector<8x64xf32>
    %15 = tpu.matmul %13, %14, %cst_7 {dimension_numbers = #tpu.dot_dimension_numbers<[1], [0], [0], [1], [0, 0, 1, 1], [], []>} : vector<8x128xf32>, vector<128x64xf32>, vector<8x64xf32> -> vector<8x64xf32>
    %c0_8 = arith.constant 0 : index
    %c0_9 = arith.constant 0 : index
    %16 = vector.load %arg4[%c0_8, %c0_9] : memref<1x64xf32, #tpu.memory_space<vmem>>, vector<1x64xf32>
    %17 = vector.broadcast %16 : vector<1x64xf32> to vector<8x64xf32>
    %18 = arith.addf %15, %17 : vector<8x64xf32>
    %19 = vector.extract_strided_slice %18 {offsets = [0, 0], sizes = [8, 32], strides = [1, 1]} : vector<8x64xf32> to vector<8x32xf32>
    %20 = vector.extract_strided_slice %18 {offsets = [0, 32], sizes = [8, 16], strides = [1, 1]} : vector<8x64xf32> to vector<8x16xf32>
    %21 = vector.extract_strided_slice %18 {offsets = [0, 48], sizes = [8, 16], strides = [1, 1]} : vector<8x64xf32> to vector<8x16xf32>
    %c0_10 = arith.constant 0 : index
    %c0_11 = arith.constant 0 : index
    %22 = vector.load %arg6[%c0_10, %c0_11] : memref<8x32xf32, #tpu.memory_space<vmem>>, vector<8x32xf32>
    %c0_12 = arith.constant 0 : index
    %c0_13 = arith.constant 0 : index
    %23 = vector.load %arg7[%c0_12, %c0_13] : memref<8x32xf32, #tpu.memory_space<vmem>>, vector<8x32xf32>
    %c0_14 = arith.constant 0 : index
    %c0_15 = arith.constant 0 : index
    %24 = vector.load %arg5[%c0_14, %c0_15] : memref<32x32xf32, #tpu.memory_space<vmem>>, vector<32x32xf32>
    %cst_16 = arith.constant dense<0.000000e+00> : vector<8x32xf32>
    %25 = tpu.matmul %19, %24, %cst_16 {dimension_numbers = #tpu.dot_dimension_numbers<[1], [0], [0], [1], [0, 0, 1, 1], [], []>} : vector<8x32xf32>, vector<32x32xf32>, vector<8x32xf32> -> vector<8x32xf32>
    %26 = arith.mulf %19, %22 : vector<8x32xf32>
    %27 = arith.mulf %25, %23 : vector<8x32xf32>
    %28 = arith.addf %26, %27 : vector<8x32xf32>
    %29 = vector.extract_strided_slice %28 {offsets = [0, 0], sizes = [8, 8], strides = [1, 1]} : vector<8x32xf32> to vector<8x8xf32>
    %30 = vector.extract_strided_slice %20 {offsets = [0, 0], sizes = [8, 8], strides = [1, 1]} : vector<8x16xf32> to vector<8x8xf32>
    %31 = vector.extract_strided_slice %21 {offsets = [0, 0], sizes = [8, 8], strides = [1, 1]} : vector<8x16xf32> to vector<8x8xf32>
    %32 = tpu.transpose %30, [1, 0] : vector<8x8xf32> -> vector<8x8xf32>
    %cst_17 = arith.constant dense<0.000000e+00> : vector<8x8xf32>
    %33 = tpu.matmul %29, %32, %cst_17 {dimension_numbers = #tpu.dot_dimension_numbers<[1], [0], [0], [1], [0, 0, 1, 1], [], []>} : vector<8x8xf32>, vector<8x8xf32>, vector<8x8xf32> -> vector<8x8xf32>
    %cst_18 = arith.constant dense<0xFF800000> : vector<8xf32>
    %34 = vector.multi_reduction <maximumf>, %33, %cst_18 [1] : vector<8x8xf32> to vector<8xf32>
    %35 = vector.shape_cast %34 : vector<8xf32> to vector<8x1xf32>
    %36 = vector.broadcast %35 : vector<8x1xf32> to vector<8x8xf32>
    %37 = arith.subf %33, %36 : vector<8x8xf32>
    %38 = math.exp %37 : vector<8x8xf32>
    %cst_19 = arith.constant dense<0.000000e+00> : vector<8xf32>
    %39 = vector.multi_reduction <add>, %38, %cst_19 [1] : vector<8x8xf32> to vector<8xf32>
    %40 = vector.shape_cast %39 : vector<8xf32> to vector<8x1xf32>
    %41 = tpu.reciprocal %40 : vector<8x1xf32> -> vector<8x1xf32>
    %42 = vector.broadcast %41 : vector<8x1xf32> to vector<8x8xf32>
    %43 = arith.mulf %38, %42 : vector<8x8xf32>
    %cst_20 = arith.constant dense<0.000000e+00> : vector<8x8xf32>
    %44 = tpu.matmul %43, %31, %cst_20 {dimension_numbers = #tpu.dot_dimension_numbers<[1], [0], [0], [1], [0, 0, 1, 1], [], []>} : vector<8x8xf32>, vector<8x8xf32>, vector<8x8xf32> -> vector<8x8xf32>
    %45 = vector.extract_strided_slice %28 {offsets = [0, 8], sizes = [8, 8], strides = [1, 1]} : vector<8x32xf32> to vector<8x8xf32>
    %46 = vector.extract_strided_slice %20 {offsets = [0, 0], sizes = [8, 8], strides = [1, 1]} : vector<8x16xf32> to vector<8x8xf32>
    %47 = vector.extract_strided_slice %21 {offsets = [0, 0], sizes = [8, 8], strides = [1, 1]} : vector<8x16xf32> to vector<8x8xf32>
    %48 = tpu.transpose %46, [1, 0] : vector<8x8xf32> -> vector<8x8xf32>
    %cst_21 = arith.constant dense<0.000000e+00> : vector<8x8xf32>
    %49 = tpu.matmul %45, %48, %cst_21 {dimension_numbers = #tpu.dot_dimension_numbers<[1], [0], [0], [1], [0, 0, 1, 1], [], []>} : vector<8x8xf32>, vector<8x8xf32>, vector<8x8xf32> -> vector<8x8xf32>
    %cst_22 = arith.constant dense<0xFF800000> : vector<8xf32>
    %50 = vector.multi_reduction <maximumf>, %49, %cst_22 [1] : vector<8x8xf32> to vector<8xf32>
    %51 = vector.shape_cast %50 : vector<8xf32> to vector<8x1xf32>
    %52 = vector.broadcast %51 : vector<8x1xf32> to vector<8x8xf32>
    %53 = arith.subf %49, %52 : vector<8x8xf32>
    %54 = math.exp %53 : vector<8x8xf32>
    %cst_23 = arith.constant dense<0.000000e+00> : vector<8xf32>
    %55 = vector.multi_reduction <add>, %54, %cst_23 [1] : vector<8x8xf32> to vector<8xf32>
    %56 = vector.shape_cast %55 : vector<8xf32> to vector<8x1xf32>
    %57 = tpu.reciprocal %56 : vector<8x1xf32> -> vector<8x1xf32>
    %58 = vector.broadcast %57 : vector<8x1xf32> to vector<8x8xf32>
    %59 = arith.mulf %54, %58 : vector<8x8xf32>
    %cst_24 = arith.constant dense<0.000000e+00> : vector<8x8xf32>
    %60 = tpu.matmul %59, %47, %cst_24 {dimension_numbers = #tpu.dot_dimension_numbers<[1], [0], [0], [1], [0, 0, 1, 1], [], []>} : vector<8x8xf32>, vector<8x8xf32>, vector<8x8xf32> -> vector<8x8xf32>
    %61 = vector.extract_strided_slice %28 {offsets = [0, 16], sizes = [8, 8], strides = [1, 1]} : vector<8x32xf32> to vector<8x8xf32>
    %62 = vector.extract_strided_slice %20 {offsets = [0, 8], sizes = [8, 8], strides = [1, 1]} : vector<8x16xf32> to vector<8x8xf32>
    %63 = vector.extract_strided_slice %21 {offsets = [0, 8], sizes = [8, 8], strides = [1, 1]} : vector<8x16xf32> to vector<8x8xf32>
    %64 = tpu.transpose %62, [1, 0] : vector<8x8xf32> -> vector<8x8xf32>
    %cst_25 = arith.constant dense<0.000000e+00> : vector<8x8xf32>
    %65 = tpu.matmul %61, %64, %cst_25 {dimension_numbers = #tpu.dot_dimension_numbers<[1], [0], [0], [1], [0, 0, 1, 1], [], []>} : vector<8x8xf32>, vector<8x8xf32>, vector<8x8xf32> -> vector<8x8xf32>
    %cst_26 = arith.constant dense<0xFF800000> : vector<8xf32>
    %66 = vector.multi_reduction <maximumf>, %65, %cst_26 [1] : vector<8x8xf32> to vector<8xf32>
    %67 = vector.shape_cast %66 : vector<8xf32> to vector<8x1xf32>
    %68 = vector.broadcast %67 : vector<8x1xf32> to vector<8x8xf32>
    %69 = arith.subf %65, %68 : vector<8x8xf32>
    %70 = math.exp %69 : vector<8x8xf32>
    %cst_27 = arith.constant dense<0.000000e+00> : vector<8xf32>
    %71 = vector.multi_reduction <add>, %70, %cst_27 [1] : vector<8x8xf32> to vector<8xf32>
    %72 = vector.shape_cast %71 : vector<8xf32> to vector<8x1xf32>
    %73 = tpu.reciprocal %72 : vector<8x1xf32> -> vector<8x1xf32>
    %74 = vector.broadcast %73 : vector<8x1xf32> to vector<8x8xf32>
    %75 = arith.mulf %70, %74 : vector<8x8xf32>
    %cst_28 = arith.constant dense<0.000000e+00> : vector<8x8xf32>
    %76 = tpu.matmul %75, %63, %cst_28 {dimension_numbers = #tpu.dot_dimension_numbers<[1], [0], [0], [1], [0, 0, 1, 1], [], []>} : vector<8x8xf32>, vector<8x8xf32>, vector<8x8xf32> -> vector<8x8xf32>
    %77 = vector.extract_strided_slice %28 {offsets = [0, 24], sizes = [8, 8], strides = [1, 1]} : vector<8x32xf32> to vector<8x8xf32>
    %78 = vector.extract_strided_slice %20 {offsets = [0, 8], sizes = [8, 8], strides = [1, 1]} : vector<8x16xf32> to vector<8x8xf32>
    %79 = vector.extract_strided_slice %21 {offsets = [0, 8], sizes = [8, 8], strides = [1, 1]} : vector<8x16xf32> to vector<8x8xf32>
    %80 = tpu.transpose %78, [1, 0] : vector<8x8xf32> -> vector<8x8xf32>
    %cst_29 = arith.constant dense<0.000000e+00> : vector<8x8xf32>
    %81 = tpu.matmul %77, %80, %cst_29 {dimension_numbers = #tpu.dot_dimension_numbers<[1], [0], [0], [1], [0, 0, 1, 1], [], []>} : vector<8x8xf32>, vector<8x8xf32>, vector<8x8xf32> -> vector<8x8xf32>
    %cst_30 = arith.constant dense<0xFF800000> : vector<8xf32>
    %82 = vector.multi_reduction <maximumf>, %81, %cst_30 [1] : vector<8x8xf32> to vector<8xf32>
    %83 = vector.shape_cast %82 : vector<8xf32> to vector<8x1xf32>
    %84 = vector.broadcast %83 : vector<8x1xf32> to vector<8x8xf32>
    %85 = arith.subf %81, %84 : vector<8x8xf32>
    %86 = math.exp %85 : vector<8x8xf32>
    %cst_31 = arith.constant dense<0.000000e+00> : vector<8xf32>
    %87 = vector.multi_reduction <add>, %86, %cst_31 [1] : vector<8x8xf32> to vector<8xf32>
    %88 = vector.shape_cast %87 : vector<8xf32> to vector<8x1xf32>
    %89 = tpu.reciprocal %88 : vector<8x1xf32> -> vector<8x1xf32>
    %90 = vector.broadcast %89 : vector<8x1xf32> to vector<8x8xf32>
    %91 = arith.mulf %86, %90 : vector<8x8xf32>
    %cst_32 = arith.constant dense<0.000000e+00> : vector<8x8xf32>
    %92 = tpu.matmul %91, %79, %cst_32 {dimension_numbers = #tpu.dot_dimension_numbers<[1], [0], [0], [1], [0, 0, 1, 1], [], []>} : vector<8x8xf32>, vector<8x8xf32>, vector<8x8xf32> -> vector<8x8xf32>
    %93 = tpu.concatenate %44, %60, %76, %92 in 1 : vector<8x8xf32>, vector<8x8xf32>, vector<8x8xf32>, vector<8x8xf32> -> vector<8x32xf32>
    %c0_33 = arith.constant 0 : index
    %c0_34 = arith.constant 0 : index
    %94 = vector.load %arg8[%c0_33, %c0_34] : memref<32x128xf32, #tpu.memory_space<vmem>>, vector<32x128xf32>
    %cst_35 = arith.constant dense<0.000000e+00> : vector<8x128xf32>
    %95 = tpu.matmul %93, %94, %cst_35 {dimension_numbers = #tpu.dot_dimension_numbers<[1], [0], [0], [1], [0, 0, 1, 1], [], []>} : vector<8x32xf32>, vector<32x128xf32>, vector<8x128xf32> -> vector<8x128xf32>
    %c0_36 = arith.constant 0 : index
    %c0_37 = arith.constant 0 : index
    %96 = vector.load %arg9[%c0_36, %c0_37] : memref<1x128xf32, #tpu.memory_space<vmem>>, vector<1x128xf32>
    %97 = vector.broadcast %96 : vector<1x128xf32> to vector<8x128xf32>
    %98 = arith.addf %95, %97 : vector<8x128xf32>
    %99 = arith.addf %98, %0 : vector<8x128xf32>
    %c0_38 = arith.constant 0 : index
    %c0_39 = arith.constant 0 : index
    %100 = vector.load %arg10[%c0_38, %c0_39] : memref<8x128xf32, #tpu.memory_space<vmem>>, vector<8x128xf32>
    tpu.vector_store %arg10[%c0_38, %c0_39], %99 {strides = array<i32>} : memref<8x128xf32, #tpu.memory_space<vmem>>, vector<8x128xf32>,
    return
  }
  func.func @transform_0(%arg0: i32) -> (i32, i32) {
    %c0_i32 = arith.constant 0 : i32
    %c0_i32_0 = arith.constant 0 : i32
    return %arg0, %c0_i32 : i32, i32
  }
  func.func @transform_1(%arg0: i32) -> (i32, i32) {
    %c0_i32 = arith.constant 0 : i32
    %c0_i32_0 = arith.constant 0 : i32
    %c0_i32_1 = arith.constant 0 : i32
    return %c0_i32, %c0_i32_0 : i32, i32
  }
  func.func @transform_2(%arg0: i32) -> (i32, i32) {
    %c0_i32 = arith.constant 0 : i32
    %c0_i32_0 = arith.constant 0 : i32
    %c0_i32_1 = arith.constant 0 : i32
    return %c0_i32, %c0_i32_0 : i32, i32
  }
  func.func @transform_3(%arg0: i32) -> (i32, i32) {
    %c0_i32 = arith.constant 0 : i32
    %c0_i32_0 = arith.constant 0 : i32
    %c0_i32_1 = arith.constant 0 : i32
    return %c0_i32, %c0_i32_0 : i32, i32
  }
  func.func @transform_4(%arg0: i32) -> (i32, i32) {
    %c0_i32 = arith.constant 0 : i32
    %c0_i32_0 = arith.constant 0 : i32
    %c0_i32_1 = arith.constant 0 : i32
    return %c0_i32, %c0_i32_0 : i32, i32
  }
  func.func @transform_5(%arg0: i32) -> (i32, i32) {
    %c0_i32 = arith.constant 0 : i32
    %c0_i32_0 = arith.constant 0 : i32
    %c0_i32_1 = arith.constant 0 : i32
    return %c0_i32, %c0_i32_0 : i32, i32
  }
  func.func @transform_6(%arg0: i32) -> (i32, i32) {
    %c0_i32 = arith.constant 0 : i32
    %c0_i32_0 = arith.constant 0 : i32
    %c0_i32_1 = arith.constant 0 : i32
    return %c0_i32, %c0_i32_0 : i32, i32
  }
  func.func @transform_7(%arg0: i32) -> (i32, i32) {
    %c0_i32 = arith.constant 0 : i32
    %c0_i32_0 = arith.constant 0 : i32
    %c0_i32_1 = arith.constant 0 : i32
    return %c0_i32, %c0_i32_0 : i32, i32
  }
  func.func @transform_8(%arg0: i32) -> (i32, i32) {
    %c0_i32 = arith.constant 0 : i32
    %c0_i32_0 = arith.constant 0 : i32
    %c0_i32_1 = arith.constant 0 : i32
    return %c0_i32, %c0_i32_0 : i32, i32
  }
  func.func @transform_9(%arg0: i32) -> (i32, i32) {
    %c0_i32 = arith.constant 0 : i32
    %c0_i32_0 = arith.constant 0 : i32
    return %arg0, %c0_i32 : i32, i32
  }
}

</mosaic_0001>

<llo_original>
// kernel: tpu_custom_call.1
$region0: #{tpu_custom_call.1}
  #allocation0 [shape = 'u32[]', space=smem, size = 0x4, offset = 0x4, fixed_abs, tag = 'smem constant byte address 0x4 - core index']
  #allocation1 [shape = 'u32[144,128]{1,0:T(1,128)}', space=vmem, size = 0x12000, scoped, tag = 'internal scratch']
  %s0 = inlined_call_operand.vmem [shape: f32[16,128], index: 0, kind: input, shape index: {}]
  %s1 = inlined_call_operand.vmem [shape: f32[1,128], index: 1, kind: input, shape index: {}]
  %s2 = inlined_call_operand.vmem [shape: f32[128,64], index: 2, kind: input, shape index: {}]
  %s3 = inlined_call_operand.vmem [shape: f32[1,64], index: 3, kind: input, shape index: {}]
  %s4 = inlined_call_operand.vmem [shape: f32[32,32], index: 4, kind: input, shape index: {}]
  %s5 = inlined_call_operand.vmem [shape: f32[8,32], index: 5, kind: input, shape index: {}]
  %s6 = inlined_call_operand.vmem [shape: f32[8,32], index: 6, kind: input, shape index: {}]
  %s7 = inlined_call_operand.vmem [shape: f32[32,128], index: 7, kind: input, shape index: {}]
  %s8 = inlined_call_operand.vmem [shape: f32[1,128], index: 8, kind: input, shape index: {}]
  %s9 = inlined_call_operand.hbm [shape: f32[16,128], index: 9, kind: output, shape index: {}]
  %s10 = sld [smem:[#allocation0]]
  $region69: #{tpu_custom_call.1} parent=0
    _
  %s12 = ssub.s32 1, %s10
  %s13 = scalar_select 0, %s12, %s10
  $region1: #{tpu_custom_call.1} parent=0
    #allocation2 [shape = 'u8[8192]{0}', space=vmem, size = 0x2000, scoped, tag = 'output window, operand 0']
    #allocation3 [shape = 's32[2]{0}', space=sflag, size = 0x8, scoped, tag = 'scoped memory for tpu_custom_call.1']
    %14 = vsyncpa [#allocation3], 0
    %s15 = scalar_lea.sflag [#allocation3], 1
    %16 = vsyncpa %s15, 0
    loop: start=0, step=1, limit=4
    $region2: #{tpu_custom_call.1} parent=1 // loop_pre_header
      _
    $region3: #{tpu_custom_call.1} parent=1 // loop_header
      %s18 = sphi 0, %s22
      %p19 = scmp.ge.s32.totalorder %s18, 4
      %s28 = sphi 0, %s30
      %s31 = sphi 0, %s28
      %s32 = sphi 0, %s31
      %s48 = sphi 0, %s32
      %s52 = sphi 0, %s52
      %s54 = sphi 0, %s52
      %s55 = sphi 0, %s54
      %s69 = sphi 0, %s55
      %s73 = sphi 0, %s73
      %s75 = sphi 0, %s73
      %s76 = sphi 0, %s75
      %s90 = sphi 0, %s76
      %s94 = sphi 0, %s94
      %s96 = sphi 0, %s94
      %s97 = sphi 0, %s96
      %s111 = sphi 0, %s97
      %s115 = sphi 0, %s115
      %s117 = sphi 0, %s115
      %s118 = sphi 0, %s117
      %s132 = sphi 0, %s118
      %s136 = sphi 0, %s136
      %s138 = sphi 0, %s136
      %s139 = sphi 0, %s138
      %s153 = sphi 0, %s139
      %s157 = sphi 0, %s157
      %s159 = sphi 0, %s157
      %s160 = sphi 0, %s159
      %s174 = sphi 0, %s160
      %s178 = sphi 0, %s178
      %s180 = sphi 0, %s178
      %s181 = sphi 0, %s180
      %s195 = sphi 0, %s181
      %s199 = sphi 0, %s199
      %s201 = sphi 0, %s199
      %s202 = sphi 0, %s201
      %s216 = sphi 0, %s202
      %s222 = sphi 0, %s224
      %s225 = sphi 0, %s222
      %s226 = sphi 0, %s225
      %s242 = sphi 0, %s226
    $region4: #{tpu_custom_call.1} parent=1 // loop_header_branch
      %21 = sbr.rel (%p19) target = $region8
    $region5: #{tpu_custom_call.1} parent=1 // loop_body
      %s23 = ssub.s32 %s18, 1
      %s24 = ssub.s32 %s18, 2
      %s25 = sadd.s32 %s18, 1
      %s26 = ssub.s32 %s18, %s25
      %p27 = scmp.eq.s32.totalorder %s26, 0
      %s29 = sadd.s32 %s28, 1
      %s30 = scalar_select %p27, %s28, %s29
      %p33 = pneg %p27
      %p34 = scmp.eq.s32.totalorder %s18, 1
      %p35 = por %p33, %p34
      %p36 = scmp.ne.s32.totalorder %s28, %s31
      %p37 = scmp.eq.s32.totalorder %s18, 0
      %p38 = por %p36, %p37
      %p39 = scmp.ne.s32.totalorder %s28, %s31
      %p40 = scmp.eq.s32.totalorder %s23, 1
      %p41 = por %p39, %p40
      %p42 = scmp.ne.s32.totalorder %s31, %s32
      %p43 = scmp.eq.s32.totalorder %s23, 0
      %p44 = por %p42, %p43
      %p45 = scmp.ne.s32.totalorder %s31, %s32
      %p46 = scmp.eq.s32.totalorder %s24, 1
      %p47 = por %p45, %p46
      %p49 = scmp.ne.s32.totalorder %s32, %s48
      %p50 = scmp.eq.s32.totalorder %s24, 0
      %p51 = por %p49, %p50
      %s53 = sadd.s32 %s52, 1
      %p56 = scmp.eq.s32.totalorder %s18, 1
      %p57 = scmp.ne.s32.totalorder %s52, %s54
      %p58 = scmp.eq.s32.totalorder %s18, 0
      %p59 = por %p57, %p58
      %p60 = scmp.ne.s32.totalorder %s52, %s54
      %p61 = scmp.eq.s32.totalorder %s23, 1
      %p62 = por %p60, %p61
      %p63 = scmp.ne.s32.totalorder %s54, %s55
      %p64 = scmp.eq.s32.totalorder %s23, 0
      %p65 = por %p63, %p64
      %p66 = scmp.ne.s32.totalorder %s54, %s55
      %p67 = scmp.eq.s32.totalorder %s24, 1
      %p68 = por %p66, %p67
      %p70 = scmp.ne.s32.totalorder %s55, %s69
      %p71 = scmp.eq.s32.totalorder %s24, 0
      %p72 = por %p70, %p71
      %s74 = sadd.s32 %s73, 1
      %p77 = scmp.eq.s32.totalorder %s18, 1
      %p78 = scmp.ne.s32.totalorder %s73, %s75
      %p79 = scmp.eq.s32.totalorder %s18, 0
      %p80 = por %p78, %p79
      %p81 = scmp.ne.s32.totalorder %s73, %s75
      %p82 = scmp.eq.s32.totalorder %s23, 1
      %p83 = por %p81, %p82
      %p84 = scmp.ne.s32.totalorder %s75, %s76
      %p85 = scmp.eq.s32.totalorder %s23, 0
      %p86 = por %p84, %p85
      %p87 = scmp.ne.s32.totalorder %s75, %s76
      %p88 = scmp.eq.s32.totalorder %s24, 1
      %p89 = por %p87, %p88
      %p91 = scmp.ne.s32.totalorder %s76, %s90
      %p92 = scmp.eq.s32.totalorder %s24, 0
      %p93 = por %p91, %p92
      %s95 = sadd.s32 %s94, 1
      %p98 = scmp.eq.s32.totalorder %s18, 1
      %p99 = scmp.ne.s32.totalorder %s94, %s96
      %p100 = scmp.eq.s32.totalorder %s18, 0
      %p101 = por %p99, %p100
      %p102 = scmp.ne.s32.totalorder %s94, %s96
      %p103 = scmp.eq.s32.totalorder %s23, 1
      %p104 = por %p102, %p103
      %p105 = scmp.ne.s32.totalorder %s96, %s97
      %p106 = scmp.eq.s32.totalorder %s23, 0
      %p107 = por %p105, %p106
      %p108 = scmp.ne.s32.totalorder %s96, %s97
      %p109 = scmp.eq.s32.totalorder %s24, 1
      %p110 = por %p108, %p109
      %p112 = scmp.ne.s32.totalorder %s97, %s111
      %p113 = scmp.eq.s32.totalorder %s24, 0
      %p114 = por %p112, %p113
      %s116 = sadd.s32 %s115, 1
      %p119 = scmp.eq.s32.totalorder %s18, 1
      %p120 = scmp.ne.s32.totalorder %s115, %s117
      %p121 = scmp.eq.s32.totalorder %s18, 0
      %p122 = por %p120, %p121
      %p123 = scmp.ne.s32.totalorder %s115, %s117
      %p124 = scmp.eq.s32.totalorder %s23, 1
      %p125 = por %p123, %p124
      %p126 = scmp.ne.s32.totalorder %s117, %s118
      %p127 = scmp.eq.s32.totalorder %s23, 0
      %p128 = por %p126, %p127
      %p129 = scmp.ne.s32.totalorder %s117, %s118
      %p130 = scmp.eq.s32.totalorder %s24, 1
      %p131 = por %p129, %p130
      %p133 = scmp.ne.s32.totalorder %s118, %s132
      %p134 = scmp.eq.s32.totalorder %s24, 0
      %p135 = por %p133, %p134
      %s137 = sadd.s32 %s136, 1
      %p140 = scmp.eq.s32.totalorder %s18, 1
      %p141 = scmp.ne.s32.totalorder %s136, %s138
      %p142 = scmp.eq.s32.totalorder %s18, 0
      %p143 = por %p141, %p142
      %p144 = scmp.ne.s32.totalorder %s136, %s138
      %p145 = scmp.eq.s32.totalorder %s23, 1
      %p146 = por %p144, %p145
      %p147 = scmp.ne.s32.totalorder %s138, %s139
      %p148 = scmp.eq.s32.totalorder %s23, 0
      %p149 = por %p147, %p148
      %p150 = scmp.ne.s32.totalorder %s138, %s139
      %p151 = scmp.eq.s32.totalorder %s24, 1
      %p152 = por %p150, %p151
      %p154 = scmp.ne.s32.totalorder %s139, %s153
      %p155 = scmp.eq.s32.totalorder %s24, 0
      %p156 = por %p154, %p155
      %s158 = sadd.s32 %s157, 1
      %p161 = scmp.eq.s32.totalorder %s18, 1
      %p162 = scmp.ne.s32.totalorder %s157, %s159
      %p163 = scmp.eq.s32.totalorder %s18, 0
      %p164 = por %p162, %p163
      %p165 = scmp.ne.s32.totalorder %s157, %s159
      %p166 = scmp.eq.s32.totalorder %s23, 1
      %p167 = por %p165, %p166
      %p168 = scmp.ne.s32.totalorder %s159, %s160
      %p169 = scmp.eq.s32.totalorder %s23, 0
      %p170 = por %p168, %p169
      %p171 = scmp.ne.s32.totalorder %s159, %s160
      %p172 = scmp.eq.s32.totalorder %s24, 1
      %p173 = por %p171, %p172
      %p175 = scmp.ne.s32.totalorder %s160, %s174
      %p176 = scmp.eq.s32.totalorder %s24, 0
      %p177 = por %p175, %p176
      %s179 = sadd.s32 %s178, 1
      %p182 = scmp.eq.s32.totalorder %s18, 1
      %p183 = scmp.ne.s32.totalorder %s178, %s180
      %p184 = scmp.eq.s32.totalorder %s18, 0
      %p185 = por %p183, %p184
      %p186 = scmp.ne.s32.totalorder %s178, %s180
      %p187 = scmp.eq.s32.totalorder %s23, 1
      %p188 = por %p186, %p187
      %p189 = scmp.ne.s32.totalorder %s180, %s181
      %p190 = scmp.eq.s32.totalorder %s23, 0
      %p191 = por %p189, %p190
      %p192 = scmp.ne.s32.totalorder %s180, %s181
      %p193 = scmp.eq.s32.totalorder %s24, 1
      %p194 = por %p192, %p193
      %p196 = scmp.ne.s32.totalorder %s181, %s195
      %p197 = scmp.eq.s32.totalorder %s24, 0
      %p198 = por %p196, %p197
      %s200 = sadd.s32 %s199, 1
      %p203 = scmp.eq.s32.totalorder %s18, 1
      %p204 = scmp.ne.s32.totalorder %s199, %s201
      %p205 = scmp.eq.s32.totalorder %s18, 0
      %p206 = por %p204, %p205
      %p207 = scmp.ne.s32.totalorder %s199, %s201
      %p208 = scmp.eq.s32.totalorder %s23, 1
      %p209 = por %p207, %p208
      %p210 = scmp.ne.s32.totalorder %s201, %s202
      %p211 = scmp.eq.s32.totalorder %s23, 0
      %p212 = por %p210, %p211
      %p213 = scmp.ne.s32.totalorder %s201, %s202
      %p214 = scmp.eq.s32.totalorder %s24, 1
      %p215 = por %p213, %p214
      %p217 = scmp.ne.s32.totalorder %s202, %s216
      %p218 = scmp.eq.s32.totalorder %s24, 0
      %p219 = por %p217, %p218
      %s220 = ssub.s32 %s18, %s25
      %p221 = scmp.eq.s32.totalorder %s220, 0
      %s223 = sadd.s32 %s222, 1
      %s224 = scalar_select %p221, %s222, %s223
      %p227 = pneg %p221
      %p228 = scmp.eq.s32.totalorder %s18, 1
      %p229 = por %p227, %p228
      %p230 = scmp.ne.s32.totalorder %s222, %s225
      %p231 = scmp.eq.s32.totalorder %s18, 0
      %p232 = por %p230, %p231
      %p233 = scmp.ne.s32.totalorder %s222, %s225
      %p234 = scmp.eq.s32.totalorder %s23, 1
      %p235 = por %p233, %p234
      %p236 = scmp.ne.s32.totalorder %s225, %s226
      %p237 = scmp.eq.s32.totalorder %s23, 0
      %p238 = por %p236, %p237
      %p239 = scmp.ne.s32.totalorder %s225, %s226
      %p240 = scmp.eq.s32.totalorder %s24, 1
      %p241 = por %p239, %p240
      %p243 = scmp.ne.s32.totalorder %s226, %s242
      %p244 = scmp.eq.s32.totalorder %s24, 0
      %p245 = por %p243, %p244
      %p246 = scmp.le.s32.totalorder 1, %s18
      %p247 = scmp.lt.s32.totalorder %s18, 3
      %p248 = pnand %p246, %p247
      %p249 = pneg %p248
      // Predicated region
      $region9: #{tpu_custom_call.1} parent=5 // pred_check
        _
      $region10: #{tpu_custom_call.1} parent=5 // pred_check_branch
        %251 = sbr.rel (%p248) target = $region12
      $region11: #{tpu_custom_call.1} parent=5 // pred_region
        %s252 = ssub.s32 %s18, 1
        // Predicated region
        $region13: #{tpu_custom_call.1} parent=11 // pred_check
          %p253 = pneg %p65
        $region14: #{tpu_custom_call.1} parent=11 // pred_check_branch
          %255 = sbr.rel (%p253) target = $region16
        $region15: #{tpu_custom_call.1} parent=11 // pred_region
          _
        $region16: #{tpu_custom_call.1} parent=11 // pred_fallthru
          _
        // Predicated region
        $region17: #{tpu_custom_call.1} parent=11 // pred_check
          %p256 = pneg %p86
        $region18: #{tpu_custom_call.1} parent=11 // pred_check_branch
          %258 = sbr.rel (%p256) target = $region20
        $region19: #{tpu_custom_call.1} parent=11 // pred_region
          _
        $region20: #{tpu_custom_call.1} parent=11 // pred_fallthru
          _
        // Predicated region
        $region21: #{tpu_custom_call.1} parent=11 // pred_check
          %p259 = pneg %p107
        $region22: #{tpu_custom_call.1} parent=11 // pred_check_branch
          %261 = sbr.rel (%p259) target = $region24
        $region23: #{tpu_custom_call.1} parent=11 // pred_region
          _
        $region24: #{tpu_custom_call.1} parent=11 // pred_fallthru
          _
        // Predicated region
        $region25: #{tpu_custom_call.1} parent=11 // pred_check
          %p262 = pneg %p128
        $region26: #{tpu_custom_call.1} parent=11 // pred_check_branch
          %264 = sbr.rel (%p262) target = $region28
        $region27: #{tpu_custom_call.1} parent=11 // pred_region
          _
        $region28: #{tpu_custom_call.1} parent=11 // pred_fallthru
          _
        // Predicated region
        $region29: #{tpu_custom_call.1} parent=11 // pred_check
          %p265 = pneg %p149
        $region30: #{tpu_custom_call.1} parent=11 // pred_check_branch
          %267 = sbr.rel (%p265) target = $region32
        $region31: #{tpu_custom_call.1} parent=11 // pred_region
          _
        $region32: #{tpu_custom_call.1} parent=11 // pred_fallthru
          _
        // Predicated region
        $region33: #{tpu_custom_call.1} parent=11 // pred_check
          %p268 = pneg %p170
        $region34: #{tpu_custom_call.1} parent=11 // pred_check_branch
          %270 = sbr.rel (%p268) target = $region36
        $region35: #{tpu_custom_call.1} parent=11 // pred_region
          _
        $region36: #{tpu_custom_call.1} parent=11 // pred_fallthru
          _
        // Predicated region
        $region37: #{tpu_custom_call.1} parent=11 // pred_check
          %p271 = pneg %p191
        $region38: #{tpu_custom_call.1} parent=11 // pred_check_branch
          %273 = sbr.rel (%p271) target = $region40
        $region39: #{tpu_custom_call.1} parent=11 // pred_region
          _
        $region40: #{tpu_custom_call.1} parent=11 // pred_fallthru
          _
        // Predicated region
        $region41: #{tpu_custom_call.1} parent=11 // pred_check
          %p274 = pneg %p212
        $region42: #{tpu_custom_call.1} parent=11 // pred_check_branch
          %276 = sbr.rel (%p274) target = $region44
        $region43: #{tpu_custom_call.1} parent=11 // pred_region
          _
        $region44: #{tpu_custom_call.1} parent=11 // pred_fallthru
          _
      $region12: #{tpu_custom_call.1} parent=5 // pred_fallthru
        _
      %p277 = scmp.lt.s32.totalorder %s18, 2
      // Predicated region
      $region45: #{tpu_custom_call.1} parent=5 // pred_check
        %p278 = pneg %p277
      $region46: #{tpu_custom_call.1} parent=5 // pred_check_branch
        %280 = sbr.rel (%p278) target = $region48
      $region47: #{tpu_custom_call.1} parent=5 // pred_region
        // Predicated region
        $region49: #{tpu_custom_call.1} parent=47 // pred_check
          %p281 = pneg %p38
        $region50: #{tpu_custom_call.1} parent=47 // pred_check_branch
          %283 = sbr.rel (%p281) target = $region52
        $region51: #{tpu_custom_call.1} parent=47 // pred_region
          %p284 = scmp.lt.s32.totalorder %s18, 1
          %s285 = scalar_select %p284, %s18, 1
          %s286 = smul.addr %s285, 8
          %s287 = scalar_lea.vmem %s0, %s286
        $region52: #{tpu_custom_call.1} parent=47 // pred_fallthru
          _
      $region48: #{tpu_custom_call.1} parent=5 // pred_fallthru
        _
      %p288 = scmp.le.s32.totalorder 1, %s18
      %p289 = scmp.lt.s32.totalorder %s18, 3
      %p290 = pnand %p288, %p289
      %p291 = pneg %p290
      // Predicated region
      $region53: #{tpu_custom_call.1} parent=5 // pred_check
        _
      $region54: #{tpu_custom_call.1} parent=5 // pred_check_branch
        %293 = sbr.rel (%p290) target = $region56
      $region55: #{tpu_custom_call.1} parent=5 // pred_region
        %s294 = ssub.s32 %s18, 1
        %p295 = scmp.lt.s32.totalorder %s23, 1
        %s296 = scalar_select %p295, %s23, 1
        %s297 = smul.addr %s296, 8
        %s298 = scalar_lea.vmem %s0, %s297
        %p299 = pneg %p44
        %p300 = pneg %p41
        %p301 = pneg %p65
        %p302 = pneg %p62
        %p303 = pneg %p86
        %p304 = pneg %p83
        %p305 = pneg %p107
        %p306 = pneg %p104
        %p307 = pneg %p128
        %p308 = pneg %p125
        %p309 = pneg %p149
        %p310 = pneg %p146
        %p311 = pneg %p170
        %p312 = pneg %p167
        %p313 = pneg %p191
        %p314 = pneg %p188
        %p315 = pneg %p212
        %p316 = pneg %p209
        %p317 = pneg %p238
        %p318 = pneg %p235
        %s319 = sand.u32 %s225, 1
        %s320 = scalar_lea.sflag [#allocation3], %s319
        %s321 = sand.u32 %s225, 1
        %s322 = smul.addr %s321, 8
        %s323 = scalar_lea.vmem [#allocation2], %s322
        %p324 = scmp.lt.s32.totalorder %s23, 1
        %s325 = scalar_select %p324, %s23, 1
        %s326 = smul.addr %s325, 8
        %s327 = scalar_lea.vmem %s0, %s326
        %v328 = vld [vmem:[%s327] sm:$0xff]
        %v329 = vmul.f32 %v328, %v328
        %330 = vadd.xlane.f32.xlu0 %v329
        %v331 = vpop.xlane.xlu0 %330
        %v332 = vmul.f32 %v331, 0.03125
        %v333 = vadd.f32 %v332, 1e-06
        %v334 = vrsqrt.pop %v333
        %v335 = vmul.f32 %v328, %v334
        %v336 = vld [vmem:[%s1] sm:$0x1]
        %v338 = vlaneseq
        %v339 = vshrl.u32 %v338, 7
        %v340 = vsub.s32 0, %v339
        %v341 = vrot.slane %v336, %v340
        %v343 = vmul.f32 %v335, %v341
        %v344 = vld [vmem:[%s2] sm:$0xff]
        %v345 = vld [vmem:[%s2 + $0x8] sm:$0xff]
        %v346 = vld [vmem:[%s2 + $0x10] sm:$0xff]
        %v347 = vld [vmem:[%s2 + $0x18] sm:$0xff]
        %v348 = vld [vmem:[%s2 + $0x20] sm:$0xff]
        %v349 = vld [vmem:[%s2 + $0x28] sm:$0xff]
        %v350 = vld [vmem:[%s2 + $0x30] sm:$0xff]
        %v351 = vld [vmem:[%s2 + $0x38] sm:$0xff]
        %v352 = vld [vmem:[%s2 + $0x40] sm:$0xff]
        %v353 = vld [vmem:[%s2 + $0x48] sm:$0xff]
        %v354 = vld [vmem:[%s2 + $0x50] sm:$0xff]
        %v355 = vld [vmem:[%s2 + $0x58] sm:$0xff]
        %v356 = vld [vmem:[%s2 + $0x60] sm:$0xff]
        %v357 = vld [vmem:[%s2 + $0x68] sm:$0xff]
        %v358 = vld [vmem:[%s2 + $0x70] sm:$0xff]
        %v359 = vld [vmem:[%s2 + $0x78] sm:$0xff]
        %v360 = vld [vmem:[%s3] sm:$0x1]
        %v362 = vlaneseq
        %v363 = vshrl.u32 %v362, 7
        %v364 = vsub.s32 0, %v363
        %v365 = vrot.slane %v360, %v364
        %367 = vmatprep.subr.mxu0 0.0
        %368 = vmatpush1.msra.mxu0 %v359
        %369 = vmatprep.subr.mxu0 0.0
        %370 = vmatpush1.msra.mxu0 %v358
        %371 = vmatprep.subr.mxu0 0.0
        %372 = vmatpush1.msra.mxu0 %v357
        %373 = vmatprep.subr.mxu0 0.0
        %374 = vmatpush1.msra.mxu0 %v356
        %375 = vmatprep.subr.mxu0 0.0
        %376 = vmatpush1.msra.mxu0 %v355
        %377 = vmatprep.subr.mxu0 0.0
        %378 = vmatpush1.msra.mxu0 %v354
        %379 = vmatprep.subr.mxu0 0.0
        %380 = vmatpush1.msra.mxu0 %v353
        %381 = vmatprep.subr.mxu0 0.0
        %382 = vmatpush1.msra.mxu0 %v352
        %383 = vmatprep.subr.mxu0 0.0
        %384 = vmatpush1.msra.mxu0 %v351
        %385 = vmatprep.subr.mxu0 0.0
        %386 = vmatpush1.msra.mxu0 %v350
        %387 = vmatprep.subr.mxu0 0.0
        %388 = vmatpush1.msra.mxu0 %v349
        %389 = vmatprep.subr.mxu0 0.0
        %390 = vmatpush1.msra.mxu0 %v348
        %391 = vmatprep.subr.mxu0 0.0
        %392 = vmatpush1.msra.mxu0 %v347
        %393 = vmatprep.subr.mxu0 0.0
        %394 = vmatpush1.msra.mxu0 %v346
        %395 = vmatprep.subr.mxu0 0.0
        %396 = vmatpush1.msra.mxu0 %v345
        %397 = vmatprep.subr.mxu0 0.0
        %398 = vmatpush1.msra.mxu0 %v344
        %399 = vmatprep.subr.mxu0 0.0
        %400 = vmatpush2.msra.mxu0 0.0
        %401 = vmatprep.subr.mxu0 0.0
        %402 = vmatpush2.msra.mxu0 0.0
        %403 = vmatprep.subr.mxu0 0.0
        %404 = vmatpush2.msra.mxu0 0.0
        %405 = vmatprep.subr.mxu0 0.0
        %406 = vmatpush2.msra.mxu0 0.0
        %407 = vmatprep.subr.mxu0 0.0
        %408 = vmatpush2.msra.mxu0 0.0
        %409 = vmatprep.subr.mxu0 0.0
        %410 = vmatpush2.msra.mxu0 0.0
        %411 = vmatprep.subr.mxu0 0.0
        %412 = vmatpush2.msra.mxu0 0.0
        %413 = vmatprep.subr.mxu0 0.0
        %414 = vmatpush2.msra.mxu0 0.0
        %415 = vmatprep.subr.mxu0 0.0
        %416 = vmatpush2.msra.mxu0 0.0
        %417 = vmatprep.subr.mxu0 0.0
        %418 = vmatpush2.msra.mxu0 0.0
        %419 = vmatprep.subr.mxu0 0.0
        %420 = vmatpush2.msra.mxu0 0.0
        %421 = vmatprep.subr.mxu0 0.0
        %422 = vmatpush2.msra.mxu0 0.0
        %423 = vmatprep.subr.mxu0 0.0
        %424 = vmatpush2.msra.mxu0 0.0
        %425 = vmatprep.subr.mxu0 0.0
        %426 = vmatpush2.msra.mxu0 0.0
        %427 = vmatprep.subr.mxu0 0.0
        %428 = vmatpush2.msra.mxu0 0.0
        %429 = vmatprep.subr.mxu0 0.0
        %430 = vmatpush2.msra.mxu0 0.0
        %431 = vmatprep.mubr.f32.mxu0 0.0
        %432 = vmatmul.mubr.f32.gmra.mxu0 %v343
        %v433 = vpop.f32.mrf.mxu0
        %v434 = vadd.f32 %v365, %v433
        %v435 = vpop.f32.mrf.mxu0
        %436 = vdwg.mxu0
        %v437 = vld [vmem:[%s5] sm:$0xff]
        %v438 = vld [vmem:[%s6] sm:$0xff]
        %v439 = vld [vmem:[%s4] sm:$0xff]
        %v440 = vld [vmem:[%s4 + $0x8] sm:$0xff]
        %v441 = vld [vmem:[%s4 + $0x10] sm:$0xff]
        %v442 = vld [vmem:[%s4 + $0x18] sm:$0xff]
        %vm443 = vcmask 261120
        %v445 = vsel %vm443, %v434, 0
        %447 = vmatprep.subr.mxu0 0.0
        %448 = vmatpush1.msra.mxu0 0.0
        %449 = vmatprep.subr.mxu0 0.0
        %450 = vmatpush1.msra.mxu0 0.0
        %451 = vmatprep.subr.mxu0 0.0
        %452 = vmatpush1.msra.mxu0 0.0
        %453 = vmatprep.subr.mxu0 0.0
        %454 = vmatpush1.msra.mxu0 0.0
        %455 = vmatprep.subr.mxu0 0.0
        %456 = vmatpush1.msra.mxu0 0.0
        %457 = vmatprep.subr.mxu0 0.0
        %458 = vmatpush1.msra.mxu0 0.0
        %459 = vmatprep.subr.mxu0 0.0
        %460 = vmatpush1.msra.mxu0 0.0
        %461 = vmatprep.subr.mxu0 0.0
        %462 = vmatpush1.msra.mxu0 0.0
        %463 = vmatprep.subr.mxu0 0.0
        %464 = vmatpush1.msra.mxu0 0.0
        %465 = vmatprep.subr.mxu0 0.0
        %466 = vmatpush1.msra.mxu0 0.0
        %467 = vmatprep.subr.mxu0 0.0
        %468 = vmatpush1.msra.mxu0 0.0
        %469 = vmatprep.subr.mxu0 0.0
        %470 = vmatpush1.msra.mxu0 0.0
        %471 = vmatprep.subr.mxu0 0.0
        %472 = vmatpush1.msra.mxu0 %v442
        %473 = vmatprep.subr.mxu0 0.0
        %474 = vmatpush1.msra.mxu0 %v441
        %475 = vmatprep.subr.mxu0 0.0
        %476 = vmatpush1.msra.mxu0 %v440
        %477 = vmatprep.subr.mxu0 0.0
        %478 = vmatpush1.msra.mxu0 %v439
        %479 = vmatprep.subr.mxu0 0.0
        %480 = vmatpush2.msra.mxu0 0.0
        %481 = vmatprep.subr.mxu0 0.0
        %482 = vmatpush2.msra.mxu0 0.0
        %483 = vmatprep.subr.mxu0 0.0
        %484 = vmatpush2.msra.mxu0 0.0
        %485 = vmatprep.subr.mxu0 0.0
        %486 = vmatpush2.msra.mxu0 0.0
        %487 = vmatprep.subr.mxu0 0.0
        %488 = vmatpush2.msra.mxu0 0.0
        %489 = vmatprep.subr.mxu0 0.0
        %490 = vmatpush2.msra.mxu0 0.0
        %491 = vmatprep.subr.mxu0 0.0
        %492 = vmatpush2.msra.mxu0 0.0
        %493 = vmatprep.subr.mxu0 0.0
        %494 = vmatpush2.msra.mxu0 0.0
        %495 = vmatprep.subr.mxu0 0.0
        %496 = vmatpush2.msra.mxu0 0.0
        %497 = vmatprep.subr.mxu0 0.0
        %498 = vmatpush2.msra.mxu0 0.0
        %499 = vmatprep.subr.mxu0 0.0
        %500 = vmatpush2.msra.mxu0 0.0
        %501 = vmatprep.subr.mxu0 0.0
        %502 = vmatpush2.msra.mxu0 0.0
        %503 = vmatprep.subr.mxu0 0.0
        %504 = vmatpush2.msra.mxu0 0.0
        %505 = vmatprep.subr.mxu0 0.0
        %506 = vmatpush2.msra.mxu0 0.0
        %507 = vmatprep.subr.mxu0 0.0
        %508 = vmatpush2.msra.mxu0 0.0
        %509 = vmatprep.subr.mxu0 0.0
        %510 = vmatpush2.msra.mxu0 0.0
        %511 = vmatprep.mubr.f32.mxu0 0.0
        %512 = vmatmul.mubr.f32.gmra.mxu0 %v445
        %v513 = vpop.f32.mrf.mxu0
        %v514 = vadd.f32 0.0, %v513
        %v515 = vpop.f32.mrf.mxu0
        %516 = vdwg.mxu0
        %v517 = vmul.f32 %v434, %v437
        %v518 = vmul.f32 %v514, %v438
        %v519 = vadd.f32 %v517, %v518
        %520 = vrot.lane.b32.xlu0 %v434, 96
        %v521 = vpop.permute.xlu0 %520
        %vm522 = vcmask 64512
        %v524 = vsel %vm522, %v519, 0
        %v526 = vsel %vm522, %v521, 0
        %528 = vmatprep.subr.mxu0 0.0
        %529 = vmatpush1.xpose.msra.mxu0 0.0
        %530 = vmatprep.subr.mxu0 0.0
        %531 = vmatpush1.xpose.msra.mxu0 0.0
        %532 = vmatprep.subr.mxu0 0.0
        %533 = vmatpush1.xpose.msra.mxu0 0.0
        %534 = vmatprep.subr.mxu0 0.0
        %535 = vmatpush1.xpose.msra.mxu0 0.0
        %536 = vmatprep.subr.mxu0 0.0
        %537 = vmatpush1.xpose.msra.mxu0 0.0
        %538 = vmatprep.subr.mxu0 0.0
        %539 = vmatpush1.xpose.msra.mxu0 0.0
        %540 = vmatprep.subr.mxu0 0.0
        %541 = vmatpush1.xpose.msra.mxu0 0.0
        %542 = vmatprep.subr.mxu0 0.0
        %543 = vmatpush1.xpose.msra.mxu0 0.0
        %544 = vmatprep.subr.mxu0 0.0
        %545 = vmatpush1.xpose.msra.mxu0 0.0
        %546 = vmatprep.subr.mxu0 0.0
        %547 = vmatpush1.xpose.msra.mxu0 0.0
        %548 = vmatprep.subr.mxu0 0.0
        %549 = vmatpush1.xpose.msra.mxu0 0.0
        %550 = vmatprep.subr.mxu0 0.0
        %551 = vmatpush1.xpose.msra.mxu0 0.0
        %552 = vmatprep.subr.mxu0 0.0
        %553 = vmatpush1.xpose.msra.mxu0 0.0
        %554 = vmatprep.subr.mxu0 0.0
        %555 = vmatpush1.xpose.msra.mxu0 0.0
        %556 = vmatprep.subr.mxu0 0.0
        %557 = vmatpush1.xpose.msra.mxu0 0.0
        %558 = vmatprep.subr.mxu0 0.0
        %559 = vmatpush1.xpose.msra.mxu0 %v526
        %560 = vmatprep.subr.mxu0 0.0
        %561 = vmatpush2.xpose.msra.mxu0 0.0
        %562 = vmatprep.subr.mxu0 0.0
        %563 = vmatpush2.xpose.msra.mxu0 0.0
        %564 = vmatprep.subr.mxu0 0.0
        %565 = vmatpush2.xpose.msra.mxu0 0.0
        %566 = vmatprep.subr.mxu0 0.0
        %567 = vmatpush2.xpose.msra.mxu0 0.0
        %568 = vmatprep.subr.mxu0 0.0
        %569 = vmatpush2.xpose.msra.mxu0 0.0
        %570 = vmatprep.subr.mxu0 0.0
        %571 = vmatpush2.xpose.msra.mxu0 0.0
        %572 = vmatprep.subr.mxu0 0.0
        %573 = vmatpush2.xpose.msra.mxu0 0.0
        %574 = vmatprep.subr.mxu0 0.0
        %575 = vmatpush2.xpose.msra.mxu0 0.0
        %576 = vmatprep.subr.mxu0 0.0
        %577 = vmatpush2.xpose.msra.mxu0 0.0
        %578 = vmatprep.subr.mxu0 0.0
        %579 = vmatpush2.xpose.msra.mxu0 0.0
        %580 = vmatprep.subr.mxu0 0.0
        %581 = vmatpush2.xpose.msra.mxu0 0.0
        %582 = vmatprep.subr.mxu0 0.0
        %583 = vmatpush2.xpose.msra.mxu0 0.0
        %584 = vmatprep.subr.mxu0 0.0
        %585 = vmatpush2.xpose.msra.mxu0 0.0
        %586 = vmatprep.subr.mxu0 0.0
        %587 = vmatpush2.xpose.msra.mxu0 0.0
        %588 = vmatprep.subr.mxu0 0.0
        %589 = vmatpush2.xpose.msra.mxu0 0.0
        %590 = vmatprep.subr.mxu0 0.0
        %591 = vmatpush2.xpose.msra.mxu0 0.0
        %592 = vmatprep.mubr.f32.mxu0 0.0
        %593 = vmatmul.mubr.f32.gmra.mxu0 %v524
        %v594 = vpop.f32.mrf.mxu0
        %v595 = vadd.f32 0.0, %v594
        %v596 = vpop.f32.mrf.mxu0
        %597 = vdwg.mxu0
        %v598 = vsel %vm522, %v595, -inf
        %599 = vmax.xlane.f32.xlu0 %v598
        %v600 = vpop.xlane.xlu0 %599
        %v601 = vsub.f32 %v595, %v600
        %v602 = vmul.f32 %v601, 1.442695
        %v603 = vpow.pop %v602
        %v604 = vsel %vm522, %v603, 0.0
        %605 = vadd.xlane.f32.xlu0 %v604
        %v606 = vpop.xlane.xlu0 %605
        %v607 = vrcp.pop %v606
        %v608 = vmul.f32 %v603, %v607
        %609 = vrot.lane.b32.xlu0 %v434, 80
        %v610 = vpop.permute.xlu0 %609
        %v613 = vsel %vm522, %v608, 0
        %615 = vmatprep.subr.mxu0 0.0
        %616 = vmatpush1.msra.mxu0 0.0
        %617 = vmatprep.subr.mxu0 0.0
        %618 = vmatpush1.msra.mxu0 0.0
        %619 = vmatprep.subr.mxu0 0.0
        %620 = vmatpush1.msra.mxu0 0.0
        %621 = vmatprep.subr.mxu0 0.0
        %622 = vmatpush1.msra.mxu0 0.0
        %623 = vmatprep.subr.mxu0 0.0
        %624 = vmatpush1.msra.mxu0 0.0
        %625 = vmatprep.subr.mxu0 0.0
        %626 = vmatpush1.msra.mxu0 0.0
        %627 = vmatprep.subr.mxu0 0.0
        %628 = vmatpush1.msra.mxu0 0.0
        %629 = vmatprep.subr.mxu0 0.0
        %630 = vmatpush1.msra.mxu0 0.0
        %631 = vmatprep.subr.mxu0 0.0
        %632 = vmatpush1.msra.mxu0 0.0
        %633 = vmatprep.subr.mxu0 0.0
        %634 = vmatpush1.msra.mxu0 0.0
        %635 = vmatprep.subr.mxu0 0.0
        %636 = vmatpush1.msra.mxu0 0.0
        %637 = vmatprep.subr.mxu0 0.0
        %638 = vmatpush1.msra.mxu0 0.0
        %639 = vmatprep.subr.mxu0 0.0
        %640 = vmatpush1.msra.mxu0 0.0
        %641 = vmatprep.subr.mxu0 0.0
        %642 = vmatpush1.msra.mxu0 0.0
        %643 = vmatprep.subr.mxu0 0.0
        %644 = vmatpush1.msra.mxu0 0.0
        %645 = vmatprep.subr.mxu0 0.0
        %646 = vmatpush1.msra.mxu0 %v610
        %647 = vmatprep.subr.mxu0 0.0
        %648 = vmatpush2.msra.mxu0 0.0
        %649 = vmatprep.subr.mxu0 0.0
        %650 = vmatpush2.msra.mxu0 0.0
        %651 = vmatprep.subr.mxu0 0.0
        %652 = vmatpush2.msra.mxu0 0.0
        %653 = vmatprep.subr.mxu0 0.0
        %654 = vmatpush2.msra.mxu0 0.0
        %655 = vmatprep.subr.mxu0 0.0
        %656 = vmatpush2.msra.mxu0 0.0
        %657 = vmatprep.subr.mxu0 0.0
        %658 = vmatpush2.msra.mxu0 0.0
        %659 = vmatprep.subr.mxu0 0.0
        %660 = vmatpush2.msra.mxu0 0.0
        %661 = vmatprep.subr.mxu0 0.0
        %662 = vmatpush2.msra.mxu0 0.0
        %663 = vmatprep.subr.mxu0 0.0
        %664 = vmatpush2.msra.mxu0 0.0
        %665 = vmatprep.subr.mxu0 0.0
        %666 = vmatpush2.msra.mxu0 0.0
        %667 = vmatprep.subr.mxu0 0.0
        %668 = vmatpush2.msra.mxu0 0.0
        %669 = vmatprep.subr.mxu0 0.0
        %670 = vmatpush2.msra.mxu0 0.0
        %671 = vmatprep.subr.mxu0 0.0
        %672 = vmatpush2.msra.mxu0 0.0
        %673 = vmatprep.subr.mxu0 0.0
        %674 = vmatpush2.msra.mxu0 0.0
        %675 = vmatprep.subr.mxu0 0.0
        %676 = vmatpush2.msra.mxu0 0.0
        %677 = vmatprep.subr.mxu0 0.0
        %678 = vmatpush2.msra.mxu0 0.0
        %679 = vmatprep.mubr.f32.mxu0 0.0
        %680 = vmatmul.mubr.f32.gmra.mxu0 %v613
        %v681 = vpop.f32.mrf.mxu0
        %v682 = vadd.f32 0.0, %v681
        %v683 = vpop.f32.mrf.mxu0
        %684 = vdwg.mxu0
        %685 = vrot.lane.b32.xlu0 %v519, 120
        %v686 = vpop.permute.xlu0 %685
        %v687 = vsel %vm522, %v686, 0
        %689 = vmatprep.subr.mxu0 0.0
        %690 = vmatpush1.xpose.msra.mxu0 0.0
        %691 = vmatprep.subr.mxu0 0.0
        %692 = vmatpush1.xpose.msra.mxu0 0.0
        %693 = vmatprep.subr.mxu0 0.0
        %694 = vmatpush1.xpose.msra.mxu0 0.0
        %695 = vmatprep.subr.mxu0 0.0
        %696 = vmatpush1.xpose.msra.mxu0 0.0
        %697 = vmatprep.subr.mxu0 0.0
        %698 = vmatpush1.xpose.msra.mxu0 0.0
        %699 = vmatprep.subr.mxu0 0.0
        %700 = vmatpush1.xpose.msra.mxu0 0.0
        %701 = vmatprep.subr.mxu0 0.0
        %702 = vmatpush1.xpose.msra.mxu0 0.0
        %703 = vmatprep.subr.mxu0 0.0
        %704 = vmatpush1.xpose.msra.mxu0 0.0
        %705 = vmatprep.subr.mxu0 0.0
        %706 = vmatpush1.xpose.msra.mxu0 0.0
        %707 = vmatprep.subr.mxu0 0.0
        %708 = vmatpush1.xpose.msra.mxu0 0.0
        %709 = vmatprep.subr.mxu0 0.0
        %710 = vmatpush1.xpose.msra.mxu0 0.0
        %711 = vmatprep.subr.mxu0 0.0
        %712 = vmatpush1.xpose.msra.mxu0 0.0
        %713 = vmatprep.subr.mxu0 0.0
        %714 = vmatpush1.xpose.msra.mxu0 0.0
        %715 = vmatprep.subr.mxu0 0.0
        %716 = vmatpush1.xpose.msra.mxu0 0.0
        %717 = vmatprep.subr.mxu0 0.0
        %718 = vmatpush1.xpose.msra.mxu0 0.0
        %719 = vmatprep.subr.mxu0 0.0
        %720 = vmatpush1.xpose.msra.mxu0 %v526
        %721 = vmatprep.subr.mxu0 0.0
        %722 = vmatpush2.xpose.msra.mxu0 0.0
        %723 = vmatprep.subr.mxu0 0.0
        %724 = vmatpush2.xpose.msra.mxu0 0.0
        %725 = vmatprep.subr.mxu0 0.0
        %726 = vmatpush2.xpose.msra.mxu0 0.0
        %727 = vmatprep.subr.mxu0 0.0
        %728 = vmatpush2.xpose.msra.mxu0 0.0
        %729 = vmatprep.subr.mxu0 0.0
        %730 = vmatpush2.xpose.msra.mxu0 0.0
        %731 = vmatprep.subr.mxu0 0.0
        %732 = vmatpush2.xpose.msra.mxu0 0.0
        %733 = vmatprep.subr.mxu0 0.0
        %734 = vmatpush2.xpose.msra.mxu0 0.0
        %735 = vmatprep.subr.mxu0 0.0
        %736 = vmatpush2.xpose.msra.mxu0 0.0
        %737 = vmatprep.subr.mxu0 0.0
        %738 = vmatpush2.xpose.msra.mxu0 0.0
        %739 = vmatprep.subr.mxu0 0.0
        %740 = vmatpush2.xpose.msra.mxu0 0.0
        %741 = vmatprep.subr.mxu0 0.0
        %742 = vmatpush2.xpose.msra.mxu0 0.0
        %743 = vmatprep.subr.mxu0 0.0
        %744 = vmatpush2.xpose.msra.mxu0 0.0
        %745 = vmatprep.subr.mxu0 0.0
        %746 = vmatpush2.xpose.msra.mxu0 0.0
        %747 = vmatprep.subr.mxu0 0.0
        %748 = vmatpush2.xpose.msra.mxu0 0.0
        %749 = vmatprep.subr.mxu0 0.0
        %750 = vmatpush2.xpose.msra.mxu0 0.0
        %751 = vmatprep.subr.mxu0 0.0
        %752 = vmatpush2.xpose.msra.mxu0 0.0
        %753 = vmatprep.mubr.f32.mxu0 0.0
        %754 = vmatmul.mubr.f32.gmra.mxu0 %v687
        %v755 = vpop.f32.mrf.mxu0
        %v756 = vadd.f32 0.0, %v755
        %v757 = vpop.f32.mrf.mxu0
        %758 = vdwg.mxu0
        %v759 = vsel %vm522, %v756, -inf
        %760 = vmax.xlane.f32.xlu0 %v759
        %v761 = vpop.xlane.xlu0 %760
        %v762 = vsub.f32 %v756, %v761
        %v763 = vmul.f32 %v762, 1.442695
        %v764 = vpow.pop %v763
        %v765 = vsel %vm522, %v764, 0.0
        %766 = vadd.xlane.f32.xlu0 %v765
        %v767 = vpop.xlane.xlu0 %766
        %v768 = vrcp.pop %v767
        %v769 = vmul.f32 %v764, %v768
        %v771 = vsel %vm522, %v769, 0
        %773 = vmatprep.subr.mxu0 0.0
        %774 = vmatpush1.msra.mxu0 0.0
        %775 = vmatprep.subr.mxu0 0.0
        %776 = vmatpush1.msra.mxu0 0.0
        %777 = vmatprep.subr.mxu0 0.0
        %778 = vmatpush1.msra.mxu0 0.0
        %779 = vmatprep.subr.mxu0 0.0
        %780 = vmatpush1.msra.mxu0 0.0
        %781 = vmatprep.subr.mxu0 0.0
        %782 = vmatpush1.msra.mxu0 0.0
        %783 = vmatprep.subr.mxu0 0.0
        %784 = vmatpush1.msra.mxu0 0.0
        %785 = vmatprep.subr.mxu0 0.0
        %786 = vmatpush1.msra.mxu0 0.0
        %787 = vmatprep.subr.mxu0 0.0
        %788 = vmatpush1.msra.mxu0 0.0
        %789 = vmatprep.subr.mxu0 0.0
        %790 = vmatpush1.msra.mxu0 0.0
        %791 = vmatprep.subr.mxu0 0.0
        %792 = vmatpush1.msra.mxu0 0.0
        %793 = vmatprep.subr.mxu0 0.0
        %794 = vmatpush1.msra.mxu0 0.0
        %795 = vmatprep.subr.mxu0 0.0
        %796 = vmatpush1.msra.mxu0 0.0
        %797 = vmatprep.subr.mxu0 0.0
        %798 = vmatpush1.msra.mxu0 0.0
        %799 = vmatprep.subr.mxu0 0.0
        %800 = vmatpush1.msra.mxu0 0.0
        %801 = vmatprep.subr.mxu0 0.0
        %802 = vmatpush1.msra.mxu0 0.0
        %803 = vmatprep.subr.mxu0 0.0
        %804 = vmatpush1.msra.mxu0 %v610
        %805 = vmatprep.subr.mxu0 0.0
        %806 = vmatpush2.msra.mxu0 0.0
        %807 = vmatprep.subr.mxu0 0.0
        %808 = vmatpush2.msra.mxu0 0.0
        %809 = vmatprep.subr.mxu0 0.0
        %810 = vmatpush2.msra.mxu0 0.0
        %811 = vmatprep.subr.mxu0 0.0
        %812 = vmatpush2.msra.mxu0 0.0
        %813 = vmatprep.subr.mxu0 0.0
        %814 = vmatpush2.msra.mxu0 0.0
        %815 = vmatprep.subr.mxu0 0.0
        %816 = vmatpush2.msra.mxu0 0.0
        %817 = vmatprep.subr.mxu0 0.0
        %818 = vmatpush2.msra.mxu0 0.0
        %819 = vmatprep.subr.mxu0 0.0
        %820 = vmatpush2.msra.mxu0 0.0
        %821 = vmatprep.subr.mxu0 0.0
        %822 = vmatpush2.msra.mxu0 0.0
        %823 = vmatprep.subr.mxu0 0.0
        %824 = vmatpush2.msra.mxu0 0.0
        %825 = vmatprep.subr.mxu0 0.0
        %826 = vmatpush2.msra.mxu0 0.0
        %827 = vmatprep.subr.mxu0 0.0
        %828 = vmatpush2.msra.mxu0 0.0
        %829 = vmatprep.subr.mxu0 0.0
        %830 = vmatpush2.msra.mxu0 0.0
        %831 = vmatprep.subr.mxu0 0.0
        %832 = vmatpush2.msra.mxu0 0.0
        %833 = vmatprep.subr.mxu0 0.0
        %834 = vmatpush2.msra.mxu0 0.0
        %835 = vmatprep.subr.mxu0 0.0
        %836 = vmatpush2.msra.mxu0 0.0
        %837 = vmatprep.mubr.f32.mxu0 0.0
        %838 = vmatmul.mubr.f32.gmra.mxu0 %v771
        %v839 = vpop.f32.mrf.mxu0
        %v840 = vadd.f32 0.0, %v839
        %v841 = vpop.f32.mrf.mxu0
        %842 = vdwg.mxu0
        %843 = vrot.lane.b32.xlu0 %v519, 112
        %v844 = vpop.permute.xlu0 %843
        %845 = vrot.lane.b32.xlu0 %v434, 88
        %v846 = vpop.permute.xlu0 %845
        %v847 = vsel %vm522, %v844, 0
        %v849 = vsel %vm522, %v846, 0
        %851 = vmatprep.subr.mxu0 0.0
        %852 = vmatpush1.xpose.msra.mxu0 0.0
        %853 = vmatprep.subr.mxu0 0.0
        %854 = vmatpush1.xpose.msra.mxu0 0.0
        %855 = vmatprep.subr.mxu0 0.0
        %856 = vmatpush1.xpose.msra.mxu0 0.0
        %857 = vmatprep.subr.mxu0 0.0
        %858 = vmatpush1.xpose.msra.mxu0 0.0
        %859 = vmatprep.subr.mxu0 0.0
        %860 = vmatpush1.xpose.msra.mxu0 0.0
        %861 = vmatprep.subr.mxu0 0.0
        %862 = vmatpush1.xpose.msra.mxu0 0.0
        %863 = vmatprep.subr.mxu0 0.0
        %864 = vmatpush1.xpose.msra.mxu0 0.0
        %865 = vmatprep.subr.mxu0 0.0
        %866 = vmatpush1.xpose.msra.mxu0 0.0
        %867 = vmatprep.subr.mxu0 0.0
        %868 = vmatpush1.xpose.msra.mxu0 0.0
        %869 = vmatprep.subr.mxu0 0.0
        %870 = vmatpush1.xpose.msra.mxu0 0.0
        %871 = vmatprep.subr.mxu0 0.0
        %872 = vmatpush1.xpose.msra.mxu0 0.0
        %873 = vmatprep.subr.mxu0 0.0
        %874 = vmatpush1.xpose.msra.mxu0 0.0
        %875 = vmatprep.subr.mxu0 0.0
        %876 = vmatpush1.xpose.msra.mxu0 0.0
        %877 = vmatprep.subr.mxu0 0.0
        %878 = vmatpush1.xpose.msra.mxu0 0.0
        %879 = vmatprep.subr.mxu0 0.0
        %880 = vmatpush1.xpose.msra.mxu0 0.0
        %881 = vmatprep.subr.mxu0 0.0
        %882 = vmatpush1.xpose.msra.mxu0 %v849
        %883 = vmatprep.subr.mxu0 0.0
        %884 = vmatpush2.xpose.msra.mxu0 0.0
        %885 = vmatprep.subr.mxu0 0.0
        %886 = vmatpush2.xpose.msra.mxu0 0.0
        %887 = vmatprep.subr.mxu0 0.0
        %888 = vmatpush2.xpose.msra.mxu0 0.0
        %889 = vmatprep.subr.mxu0 0.0
        %890 = vmatpush2.xpose.msra.mxu0 0.0
        %891 = vmatprep.subr.mxu0 0.0
        %892 = vmatpush2.xpose.msra.mxu0 0.0
        %893 = vmatprep.subr.mxu0 0.0
        %894 = vmatpush2.xpose.msra.mxu0 0.0
        %895 = vmatprep.subr.mxu0 0.0
        %896 = vmatpush2.xpose.msra.mxu0 0.0
        %897 = vmatprep.subr.mxu0 0.0
        %898 = vmatpush2.xpose.msra.mxu0 0.0
        %899 = vmatprep.subr.mxu0 0.0
        %900 = vmatpush2.xpose.msra.mxu0 0.0
        %901 = vmatprep.subr.mxu0 0.0
        %902 = vmatpush2.xpose.msra.mxu0 0.0
        %903 = vmatprep.subr.mxu0 0.0
        %904 = vmatpush2.xpose.msra.mxu0 0.0
        %905 = vmatprep.subr.mxu0 0.0
        %906 = vmatpush2.xpose.msra.mxu0 0.0
        %907 = vmatprep.subr.mxu0 0.0
        %908 = vmatpush2.xpose.msra.mxu0 0.0
        %909 = vmatprep.subr.mxu0 0.0
        %910 = vmatpush2.xpose.msra.mxu0 0.0
        %911 = vmatprep.subr.mxu0 0.0
        %912 = vmatpush2.xpose.msra.mxu0 0.0
        %913 = vmatprep.subr.mxu0 0.0
        %914 = vmatpush2.xpose.msra.mxu0 0.0
        %915 = vmatprep.mubr.f32.mxu0 0.0
        %916 = vmatmul.mubr.f32.gmra.mxu0 %v847
        %v917 = vpop.f32.mrf.mxu0
        %v918 = vadd.f32 0.0, %v917
        %v919 = vpop.f32.mrf.mxu0
        %920 = vdwg.mxu0
        %v921 = vsel %vm522, %v918, -inf
        %922 = vmax.xlane.f32.xlu0 %v921
        %v923 = vpop.xlane.xlu0 %922
        %v924 = vsub.f32 %v918, %v923
        %v925 = vmul.f32 %v924, 1.442695
        %v926 = vpow.pop %v925
        %v927 = vsel %vm522, %v926, 0.0
        %928 = vadd.xlane.f32.xlu0 %v927
        %v929 = vpop.xlane.xlu0 %928
        %v930 = vrcp.pop %v929
        %v931 = vmul.f32 %v926, %v930
        %932 = vrot.lane.b32.xlu0 %v434, 72
        %v933 = vpop.permute.xlu0 %932
        %v936 = vsel %vm522, %v931, 0
        %938 = vmatprep.subr.mxu0 0.0
        %939 = vmatpush1.msra.mxu0 0.0
        %940 = vmatprep.subr.mxu0 0.0
        %941 = vmatpush1.msra.mxu0 0.0
        %942 = vmatprep.subr.mxu0 0.0
        %943 = vmatpush1.msra.mxu0 0.0
        %944 = vmatprep.subr.mxu0 0.0
        %945 = vmatpush1.msra.mxu0 0.0
        %946 = vmatprep.subr.mxu0 0.0
        %947 = vmatpush1.msra.mxu0 0.0
        %948 = vmatprep.subr.mxu0 0.0
        %949 = vmatpush1.msra.mxu0 0.0
        %950 = vmatprep.subr.mxu0 0.0
        %951 = vmatpush1.msra.mxu0 0.0
        %952 = vmatprep.subr.mxu0 0.0
        %953 = vmatpush1.msra.mxu0 0.0
        %954 = vmatprep.subr.mxu0 0.0
        %955 = vmatpush1.msra.mxu0 0.0
        %956 = vmatprep.subr.mxu0 0.0
        %957 = vmatpush1.msra.mxu0 0.0
        %958 = vmatprep.subr.mxu0 0.0
        %959 = vmatpush1.msra.mxu0 0.0
        %960 = vmatprep.subr.mxu0 0.0
        %961 = vmatpush1.msra.mxu0 0.0
        %962 = vmatprep.subr.mxu0 0.0
        %963 = vmatpush1.msra.mxu0 0.0
        %964 = vmatprep.subr.mxu0 0.0
        %965 = vmatpush1.msra.mxu0 0.0
        %966 = vmatprep.subr.mxu0 0.0
        %967 = vmatpush1.msra.mxu0 0.0
        %968 = vmatprep.subr.mxu0 0.0
        %969 = vmatpush1.msra.mxu0 %v933
        %970 = vmatprep.subr.mxu0 0.0
        %971 = vmatpush2.msra.mxu0 0.0
        %972 = vmatprep.subr.mxu0 0.0
        %973 = vmatpush2.msra.mxu0 0.0
        %974 = vmatprep.subr.mxu0 0.0
        %975 = vmatpush2.msra.mxu0 0.0
        %976 = vmatprep.subr.mxu0 0.0
        %977 = vmatpush2.msra.mxu0 0.0
        %978 = vmatprep.subr.mxu0 0.0
        %979 = vmatpush2.msra.mxu0 0.0
        %980 = vmatprep.subr.mxu0 0.0
        %981 = vmatpush2.msra.mxu0 0.0
        %982 = vmatprep.subr.mxu0 0.0
        %983 = vmatpush2.msra.mxu0 0.0
        %984 = vmatprep.subr.mxu0 0.0
        %985 = vmatpush2.msra.mxu0 0.0
        %986 = vmatprep.subr.mxu0 0.0
        %987 = vmatpush2.msra.mxu0 0.0
        %988 = vmatprep.subr.mxu0 0.0
        %989 = vmatpush2.msra.mxu0 0.0
        %990 = vmatprep.subr.mxu0 0.0
        %991 = vmatpush2.msra.mxu0 0.0
        %992 = vmatprep.subr.mxu0 0.0
        %993 = vmatpush2.msra.mxu0 0.0
        %994 = vmatprep.subr.mxu0 0.0
        %995 = vmatpush2.msra.mxu0 0.0
        %996 = vmatprep.subr.mxu0 0.0
        %997 = vmatpush2.msra.mxu0 0.0
        %998 = vmatprep.subr.mxu0 0.0
        %999 = vmatpush2.msra.mxu0 0.0
        %1000 = vmatprep.subr.mxu0 0.0
        %1001 = vmatpush2.msra.mxu0 0.0
        %1002 = vmatprep.mubr.f32.mxu0 0.0
        %1003 = vmatmul.mubr.f32.gmra.mxu0 %v936
        %v1004 = vpop.f32.mrf.mxu0
        %v1005 = vadd.f32 0.0, %v1004
        %v1006 = vpop.f32.mrf.mxu0
        %1007 = vdwg.mxu0
        %1008 = vrot.lane.b32.xlu0 %v519, 104
        %v1009 = vpop.permute.xlu0 %1008
        %v1010 = vsel %vm522, %v1009, 0
        %1012 = vmatprep.subr.mxu0 0.0
        %1013 = vmatpush1.xpose.msra.mxu0 0.0
        %1014 = vmatprep.subr.mxu0 0.0
        %1015 = vmatpush1.xpose.msra.mxu0 0.0
        %1016 = vmatprep.subr.mxu0 0.0
        %1017 = vmatpush1.xpose.msra.mxu0 0.0
        %1018 = vmatprep.subr.mxu0 0.0
        %1019 = vmatpush1.xpose.msra.mxu0 0.0
        %1020 = vmatprep.subr.mxu0 0.0
        %1021 = vmatpush1.xpose.msra.mxu0 0.0
        %1022 = vmatprep.subr.mxu0 0.0
        %1023 = vmatpush1.xpose.msra.mxu0 0.0
        %1024 = vmatprep.subr.mxu0 0.0
        %1025 = vmatpush1.xpose.msra.mxu0 0.0
        %1026 = vmatprep.subr.mxu0 0.0
        %1027 = vmatpush1.xpose.msra.mxu0 0.0
        %1028 = vmatprep.subr.mxu0 0.0
        %1029 = vmatpush1.xpose.msra.mxu0 0.0
        %1030 = vmatprep.subr.mxu0 0.0
        %1031 = vmatpush1.xpose.msra.mxu0 0.0
        %1032 = vmatprep.subr.mxu0 0.0
        %1033 = vmatpush1.xpose.msra.mxu0 0.0
        %1034 = vmatprep.subr.mxu0 0.0
        %1035 = vmatpush1.xpose.msra.mxu0 0.0
        %1036 = vmatprep.subr.mxu0 0.0
        %1037 = vmatpush1.xpose.msra.mxu0 0.0
        %1038 = vmatprep.subr.mxu0 0.0
        %1039 = vmatpush1.xpose.msra.mxu0 0.0
        %1040 = vmatprep.subr.mxu0 0.0
        %1041 = vmatpush1.xpose.msra.mxu0 0.0
        %1042 = vmatprep.subr.mxu0 0.0
        %1043 = vmatpush1.xpose.msra.mxu0 %v849
        %1044 = vmatprep.subr.mxu0 0.0
        %1045 = vmatpush2.xpose.msra.mxu0 0.0
        %1046 = vmatprep.subr.mxu0 0.0
        %1047 = vmatpush2.xpose.msra.mxu0 0.0
        %1048 = vmatprep.subr.mxu0 0.0
        %1049 = vmatpush2.xpose.msra.mxu0 0.0
        %1050 = vmatprep.subr.mxu0 0.0
        %1051 = vmatpush2.xpose.msra.mxu0 0.0
        %1052 = vmatprep.subr.mxu0 0.0
        %1053 = vmatpush2.xpose.msra.mxu0 0.0
        %1054 = vmatprep.subr.mxu0 0.0
        %1055 = vmatpush2.xpose.msra.mxu0 0.0
        %1056 = vmatprep.subr.mxu0 0.0
        %1057 = vmatpush2.xpose.msra.mxu0 0.0
        %1058 = vmatprep.subr.mxu0 0.0
        %1059 = vmatpush2.xpose.msra.mxu0 0.0
        %1060 = vmatprep.subr.mxu0 0.0
        %1061 = vmatpush2.xpose.msra.mxu0 0.0
        %1062 = vmatprep.subr.mxu0 0.0
        %1063 = vmatpush2.xpose.msra.mxu0 0.0
        %1064 = vmatprep.subr.mxu0 0.0
        %1065 = vmatpush2.xpose.msra.mxu0 0.0
        %1066 = vmatprep.subr.mxu0 0.0
        %1067 = vmatpush2.xpose.msra.mxu0 0.0
        %1068 = vmatprep.subr.mxu0 0.0
        %1069 = vmatpush2.xpose.msra.mxu0 0.0
        %1070 = vmatprep.subr.mxu0 0.0
        %1071 = vmatpush2.xpose.msra.mxu0 0.0
        %1072 = vmatprep.subr.mxu0 0.0
        %1073 = vmatpush2.xpose.msra.mxu0 0.0
        %1074 = vmatprep.subr.mxu0 0.0
        %1075 = vmatpush2.xpose.msra.mxu0 0.0
        %1076 = vmatprep.mubr.f32.mxu0 0.0
        %1077 = vmatmul.mubr.f32.gmra.mxu0 %v1010
        %v1078 = vpop.f32.mrf.mxu0
        %v1079 = vadd.f32 0.0, %v1078
        %v1080 = vpop.f32.mrf.mxu0
        %1081 = vdwg.mxu0
        %v1082 = vsel %vm522, %v1079, -inf
        %1083 = vmax.xlane.f32.xlu0 %v1082
        %v1084 = vpop.xlane.xlu0 %1083
        %v1085 = vsub.f32 %v1079, %v1084
        %v1086 = vmul.f32 %v1085, 1.442695
        %v1087 = vpow.pop %v1086
        %v1088 = vsel %vm522, %v1087, 0.0
        %1089 = vadd.xlane.f32.xlu0 %v1088
        %v1090 = vpop.xlane.xlu0 %1089
        %v1091 = vrcp.pop %v1090
        %v1092 = vmul.f32 %v1087, %v1091
        %v1094 = vsel %vm522, %v1092, 0
        %1096 = vmatprep.subr.mxu0 0.0
        %1097 = vmatpush1.msra.mxu0 0.0
        %1098 = vmatprep.subr.mxu0 0.0
        %1099 = vmatpush1.msra.mxu0 0.0
        %1100 = vmatprep.subr.mxu0 0.0
        %1101 = vmatpush1.msra.mxu0 0.0
        %1102 = vmatprep.subr.mxu0 0.0
        %1103 = vmatpush1.msra.mxu0 0.0
        %1104 = vmatprep.subr.mxu0 0.0
        %1105 = vmatpush1.msra.mxu0 0.0
        %1106 = vmatprep.subr.mxu0 0.0
        %1107 = vmatpush1.msra.mxu0 0.0
        %1108 = vmatprep.subr.mxu0 0.0
        %1109 = vmatpush1.msra.mxu0 0.0
        %1110 = vmatprep.subr.mxu0 0.0
        %1111 = vmatpush1.msra.mxu0 0.0
        %1112 = vmatprep.subr.mxu0 0.0
        %1113 = vmatpush1.msra.mxu0 0.0
        %1114 = vmatprep.subr.mxu0 0.0
        %1115 = vmatpush1.msra.mxu0 0.0
        %1116 = vmatprep.subr.mxu0 0.0
        %1117 = vmatpush1.msra.mxu0 0.0
        %1118 = vmatprep.subr.mxu0 0.0
        %1119 = vmatpush1.msra.mxu0 0.0
        %1120 = vmatprep.subr.mxu0 0.0
        %1121 = vmatpush1.msra.mxu0 0.0
        %1122 = vmatprep.subr.mxu0 0.0
        %1123 = vmatpush1.msra.mxu0 0.0
        %1124 = vmatprep.subr.mxu0 0.0
        %1125 = vmatpush1.msra.mxu0 0.0
        %1126 = vmatprep.subr.mxu0 0.0
        %1127 = vmatpush1.msra.mxu0 %v933
        %1128 = vmatprep.subr.mxu0 0.0
        %1129 = vmatpush2.msra.mxu0 0.0
        %1130 = vmatprep.subr.mxu0 0.0
        %1131 = vmatpush2.msra.mxu0 0.0
        %1132 = vmatprep.subr.mxu0 0.0
        %1133 = vmatpush2.msra.mxu0 0.0
        %1134 = vmatprep.subr.mxu0 0.0
        %1135 = vmatpush2.msra.mxu0 0.0
        %1136 = vmatprep.subr.mxu0 0.0
        %1137 = vmatpush2.msra.mxu0 0.0
        %1138 = vmatprep.subr.mxu0 0.0
        %1139 = vmatpush2.msra.mxu0 0.0
        %1140 = vmatprep.subr.mxu0 0.0
        %1141 = vmatpush2.msra.mxu0 0.0
        %1142 = vmatprep.subr.mxu0 0.0
        %1143 = vmatpush2.msra.mxu0 0.0
        %1144 = vmatprep.subr.mxu0 0.0
        %1145 = vmatpush2.msra.mxu0 0.0
        %1146 = vmatprep.subr.mxu0 0.0
        %1147 = vmatpush2.msra.mxu0 0.0
        %1148 = vmatprep.subr.mxu0 0.0
        %1149 = vmatpush2.msra.mxu0 0.0
        %1150 = vmatprep.subr.mxu0 0.0
        %1151 = vmatpush2.msra.mxu0 0.0
        %1152 = vmatprep.subr.mxu0 0.0
        %1153 = vmatpush2.msra.mxu0 0.0
        %1154 = vmatprep.subr.mxu0 0.0
        %1155 = vmatpush2.msra.mxu0 0.0
        %1156 = vmatprep.subr.mxu0 0.0
        %1157 = vmatpush2.msra.mxu0 0.0
        %1158 = vmatprep.subr.mxu0 0.0
        %1159 = vmatpush2.msra.mxu0 0.0
        %1160 = vmatprep.mubr.f32.mxu0 0.0
        %1161 = vmatmul.mubr.f32.gmra.mxu0 %v1094
        %v1162 = vpop.f32.mrf.mxu0
        %v1163 = vadd.f32 0.0, %v1162
        %v1164 = vpop.f32.mrf.mxu0
        %1165 = vdwg.mxu0
        %1167 = vrot.lane.b32.xlu0 %v840, 8
        %v1168 = vpop.permute.xlu0 %1167
        %1171 = vrot.lane.b32.xlu0 %v1005, 16
        %v1172 = vpop.permute.xlu0 %1171
        %1175 = vrot.lane.b32.xlu0 %v1163, 24
        %v1176 = vpop.permute.xlu0 %1175
        %v1178 = vsel %vm522, %v682, %v1168
        %vm1179 = vcmask 130048
        %v1180 = vsel %vm1179, %v1178, %v1172
        %vm1181 = vcmask 195584
        %v1182 = vsel %vm1181, %v1180, %v1176
        %v1183 = vld [vmem:[%s7] sm:$0xff]
        %v1184 = vld [vmem:[%s7 + $0x8] sm:$0xff]
        %v1185 = vld [vmem:[%s7 + $0x10] sm:$0xff]
        %v1186 = vld [vmem:[%s7 + $0x18] sm:$0xff]
        %v1187 = vld [vmem:[%s8] sm:$0x1]
        %v1189 = vlaneseq
        %v1190 = vshrl.u32 %v1189, 7
        %v1191 = vsub.s32 0, %v1190
        %v1192 = vrot.slane %v1187, %v1191
        %v1195 = vsel %vm443, %v1182, 0
        %1197 = vmatprep.subr.mxu0 0.0
        %1198 = vmatpush1.msra.mxu0 0.0
        %1199 = vmatprep.subr.mxu0 0.0
        %1200 = vmatpush1.msra.mxu0 0.0
        %1201 = vmatprep.subr.mxu0 0.0
        %1202 = vmatpush1.msra.mxu0 0.0
        %1203 = vmatprep.subr.mxu0 0.0
        %1204 = vmatpush1.msra.mxu0 0.0
        %1205 = vmatprep.subr.mxu0 0.0
        %1206 = vmatpush1.msra.mxu0 0.0
        %1207 = vmatprep.subr.mxu0 0.0
        %1208 = vmatpush1.msra.mxu0 0.0
        %1209 = vmatprep.subr.mxu0 0.0
        %1210 = vmatpush1.msra.mxu0 0.0
        %1211 = vmatprep.subr.mxu0 0.0
        %1212 = vmatpush1.msra.mxu0 0.0
        %1213 = vmatprep.subr.mxu0 0.0
        %1214 = vmatpush1.msra.mxu0 0.0
        %1215 = vmatprep.subr.mxu0 0.0
        %1216 = vmatpush1.msra.mxu0 0.0
        %1217 = vmatprep.subr.mxu0 0.0
        %1218 = vmatpush1.msra.mxu0 0.0
        %1219 = vmatprep.subr.mxu0 0.0
        %1220 = vmatpush1.msra.mxu0 0.0
        %1221 = vmatprep.subr.mxu0 0.0
        %1222 = vmatpush1.msra.mxu0 %v1186
        %1223 = vmatprep.subr.mxu0 0.0
        %1224 = vmatpush1.msra.mxu0 %v1185
        %1225 = vmatprep.subr.mxu0 0.0
        %1226 = vmatpush1.msra.mxu0 %v1184
        %1227 = vmatprep.subr.mxu0 0.0
        %1228 = vmatpush1.msra.mxu0 %v1183
        %1229 = vmatprep.subr.mxu0 0.0
        %1230 = vmatpush2.msra.mxu0 0.0
        %1231 = vmatprep.subr.mxu0 0.0
        %1232 = vmatpush2.msra.mxu0 0.0
        %1233 = vmatprep.subr.mxu0 0.0
        %1234 = vmatpush2.msra.mxu0 0.0
        %1235 = vmatprep.subr.mxu0 0.0
        %1236 = vmatpush2.msra.mxu0 0.0
        %1237 = vmatprep.subr.mxu0 0.0
        %1238 = vmatpush2.msra.mxu0 0.0
        %1239 = vmatprep.subr.mxu0 0.0
        %1240 = vmatpush2.msra.mxu0 0.0
        %1241 = vmatprep.subr.mxu0 0.0
        %1242 = vmatpush2.msra.mxu0 0.0
        %1243 = vmatprep.subr.mxu0 0.0
        %1244 = vmatpush2.msra.mxu0 0.0
        %1245 = vmatprep.subr.mxu0 0.0
        %1246 = vmatpush2.msra.mxu0 0.0
        %1247 = vmatprep.subr.mxu0 0.0
        %1248 = vmatpush2.msra.mxu0 0.0
        %1249 = vmatprep.subr.mxu0 0.0
        %1250 = vmatpush2.msra.mxu0 0.0
        %1251 = vmatprep.subr.mxu0 0.0
        %1252 = vmatpush2.msra.mxu0 0.0
        %1253 = vmatprep.subr.mxu0 0.0
        %1254 = vmatpush2.msra.mxu0 0.0
        %1255 = vmatprep.subr.mxu0 0.0
        %1256 = vmatpush2.msra.mxu0 0.0
        %1257 = vmatprep.subr.mxu0 0.0
        %1258 = vmatpush2.msra.mxu0 0.0
        %1259 = vmatprep.subr.mxu0 0.0
        %1260 = vmatpush2.msra.mxu0 0.0
        %1261 = vmatprep.mubr.f32.mxu0 0.0
        %1262 = vmatmul.mubr.f32.gmra.mxu0 %v1195
        %v1263 = vpop.f32.mrf.mxu0
        %v1264 = vadd.f32 %v1192, %v1263
        %v1265 = vpop.f32.mrf.mxu0
        %1266 = vdwg.mxu0
        %v1267 = vadd.f32 %v1264, %v328
        %1268 = vst [vmem:[%s323] sm:$0xff] %v1267
        %s1269 = sand.u32 %s225, 1
        %s1270 = scalar_lea.sflag [#allocation3], %s1269
        %s1271 = sand.u32 %s225, 1
        %s1272 = smul.addr %s1271, 8
        %s1273 = scalar_lea.vmem [#allocation2], %s1272
        // Predicated region
        $region57: #{tpu_custom_call.1} parent=55 // pred_check
          %p1274 = pneg %p235
        $region58: #{tpu_custom_call.1} parent=55 // pred_check_branch
          %1276 = sbr.rel (%p1274) target = $region60
        $region59: #{tpu_custom_call.1} parent=55 // pred_region
          %s1278 = ssub.s32 128, 128
          %1279 = vsyncadd %s1270, %s1278
          %s1280 = smul.addr %s23, 128
          %s1281 = scalar_lea.hbm %s9, %s1280
          %s1283 = sshll.u32 %s1273, 4
          %s1284 = int_to_ptr.vmem [resolvable:$true] %s1283
          %1286 = dma.vmem_to_hbm [thread:$0]  %s1284, 128, %s1281, %s1270
        $region60: #{tpu_custom_call.1} parent=55 // pred_fallthru
          _
      $region56: #{tpu_custom_call.1} parent=5 // pred_fallthru
        _
      %p1287 = scmp.le.s32.totalorder 2, %s18
      // Predicated region
      $region61: #{tpu_custom_call.1} parent=5 // pred_check
        %p1288 = pneg %p1287
      $region62: #{tpu_custom_call.1} parent=5 // pred_check_branch
        %1290 = sbr.rel (%p1288) target = $region64
      $region63: #{tpu_custom_call.1} parent=5 // pred_region
        %s1291 = ssub.s32 %s18, 2
        // Predicated region
        $region65: #{tpu_custom_call.1} parent=63 // pred_check
          %p1292 = pneg %p241
        $region66: #{tpu_custom_call.1} parent=63 // pred_check_branch
          %1294 = sbr.rel (%p1292) target = $region68
        $region67: #{tpu_custom_call.1} parent=63 // pred_region
          %s1295 = sand.u32 %s226, 1
          %s1296 = scalar_lea.sflag [#allocation3], %s1295
          %s1297 = sand.u32 %s226, 1
          %s1298 = smul.addr %s1297, 8
          %s1299 = scalar_lea.vmem [#allocation2], %s1298
          %1300 = dma.done %s1296, 128
        $region68: #{tpu_custom_call.1} parent=63 // pred_fallthru
          _
      $region64: #{tpu_custom_call.1} parent=5 // pred_fallthru
        _
    $region6: #{tpu_custom_call.1} parent=1 // loop_footer
      %s22 = sadd.s32 1, %s18
    $region7: #{tpu_custom_call.1} parent=1 // loop_footer_branch
      %17 = sbr.rel target = $region3
    $region8: #{tpu_custom_call.1} parent=1 // loop_exit
      _
    %1301 = vsyncpa [#allocation3], 1
    %s1302 = scalar_lea.sflag [#allocation3], 1
    %1303 = vsyncpa %s1302, 1

</llo_original>
